<compile_context>
chip_gen: v7x
topology: tpu7x:2x2x1
jax: 0.10.0
libtpu: 0.0.40
codegen_flags: <defaults>
</compile_context>

<pallas_src>
import functools

import jax
import jax.numpy as jnp
from jax.experimental import pallas as pl
from jax.experimental.pallas import tpu as pltpu

C = 64          # channels fixed by the module (Conv2d(64, 64, 3))
KH = KW = 3


def resblock_kernel(x_ref, w1_ref, w2_ref, mask_ref, o_ref,
                    xb_ref, mid_ref, *, H, W):
    """One batch element per grid step (NCHW, spatial flattened on lanes).

    x_ref    : (C, PF)        f32   zero-padded input image, flattened
                                    (frame = (H+3) rows x (W+2) cols)
    w1_ref   : (3, C, 3*C)    bf16  conv1 weights, [dy, cout, dx*Cin+cin]
    w2_ref   : (3, C, 3*C)    bf16  conv2 weights, 0.1 scale pre-folded
    mask_ref : (1, HW2)       f32   1.0 on valid columns, 0.0 on the 2
                                    per-row garbage columns
    o_ref    : (C, HW2)       f32   output slab (garbage cols dropped outside)
    xb_ref   : (C, PF)        bf16  scratch: bf16 copy of the padded input
    mid_ref  : (C, PF)        bf16  scratch: padded relu(conv1) frame
    """
    Wp = W + 2
    HW2 = H * Wp                     # flattened output slab length
    PF = x_ref.shape[1]              # (H + 3) * (W + 2)
    Cout = w1_ref.shape[1]

    # Single bf16 cast of the padded input (aligned, full-width store).
    xb_ref[...] = x_ref[...].astype(jnp.bfloat16)

    def conv3x3(src_ref, w_ref):
        # Weights as LHS (Cout, 3C), im2col slab as RHS (3C, HW2): spatial on
        # lanes -> full MXU N-fill and lane-dense results.  3 accumulating
        # K=192 matmuls (one per dy) instead of one K=576 concat.
        acc = jnp.zeros((Cout, HW2), jnp.float32)
        for dy in range(KH):
            base = dy * Wp
            col = jnp.concatenate(
                [src_ref[:, base + dx: base + dx + HW2] for dx in range(KW)],
                axis=0)                                       # (3C, HW2) bf16
            acc = acc + jnp.dot(w_ref[dy], col,
                                preferred_element_type=jnp.float32)
        return acc                                            # (Cout, HW2) f32

    # conv1 + ReLU.  Zero the per-row garbage columns (they land on the
    # left/right padding positions of the mid frame) and store the interior
    # into the padded scratch; zero the small halo strips every step so the
    # grid axis carries no cross-step state ("parallel"-safe).
    h1 = jnp.maximum(conv3x3(xb_ref, w1_ref), 0.0)            # (Cout, HW2) f32
    mid_ref[:, 0:W + 3] = jnp.zeros((Cout, W + 3), jnp.bfloat16)
    mid_ref[:, W + 3 + HW2:PF] = jnp.zeros(
        (Cout, PF - (W + 3 + HW2)), jnp.bfloat16)
    mid_ref[:, W + 3:W + 3 + HW2] = (h1 * mask_ref[...]).astype(jnp.bfloat16)

    # conv2 (0.1 already folded into w2) + identity, f32 epilogue.
    h2 = conv3x3(mid_ref, w2_ref)                             # (Cout, HW2) f32
    identity = x_ref[:, W + 3:W + 3 + HW2]                    # f32, only now
    o_ref[...] = (h2 + identity).astype(o_ref.dtype)


def residual_block(x_nchw, w1, w2):
    """x_nchw: (B, C, H, W) f32.  w1, w2: (Cout, Cin, KH, KW) f32 (OIHW)."""
    B, Cc, H, W = x_nchw.shape
    assert Cc == C
    Wp = W + 2
    HW2 = H * Wp
    PF = (H + 3) * Wp        # 1 top pad row, 2 bottom pad rows (slack so the
                             # bottom-right taps never slice past the frame)

    # Zero-pad and flatten the spatial dims onto the lane axis.
    xpad = jnp.pad(x_nchw, ((0, 0), (0, 0), (1, 2), (1, 1))).reshape(B, Cc, PF)

    # Weight layout: w_r[dy, cout, dx*Cin + cin] = w[cout, cin, dy, dx], bf16.
    # 0.1 residual scale folded into w2 in f32 before the bf16 cast.
    def prep(w, scale):
        wr = jnp.transpose(w, (2, 0, 3, 1)).reshape(KH, C, KW * C)
        return (wr * scale).astype(jnp.bfloat16)
    w1r = prep(w1, 1.0)
    w2r = prep(w2, 0.1)

    # Valid-column mask for the flattened slab (1.0 on the W real columns of
    # each row, 0.0 on the 2 trailing garbage columns).
    col_idx = jnp.arange(HW2, dtype=jnp.int32) % Wp
    mask = (col_idx < W).astype(jnp.float32).reshape(1, HW2)

    grid_spec = pltpu.PrefetchScalarGridSpec(
        num_scalar_prefetch=0,
        grid=(B,),
        in_specs=[
            pl.BlockSpec((pl.Squeezed(), Cc, PF), lambda b: (b, 0, 0)),
            pl.BlockSpec((KH, Cc, KW * Cc), lambda b: (0, 0, 0)),
            pl.BlockSpec((KH, Cc, KW * Cc), lambda b: (0, 0, 0)),
            pl.BlockSpec((1, HW2), lambda b: (0, 0)),
        ],
        out_specs=pl.BlockSpec((pl.Squeezed(), Cc, HW2), lambda b: (b, 0, 0)),
        scratch_shapes=[
            pltpu.VMEM((Cc, PF), jnp.bfloat16),   # bf16 padded input
            pltpu.VMEM((Cc, PF), jnp.bfloat16),   # padded relu(conv1)
        ],
    )

    out_flat = pl.pallas_call(
        functools.partial(resblock_kernel, H=H, W=W),
        out_shape=jax.ShapeDtypeStruct((B, Cc, HW2), x_nchw.dtype),
        grid_spec=grid_spec,
        compiler_params=pltpu.CompilerParams(
            dimension_semantics=("parallel",),     # no cross-step scratch state
            vmem_limit_bytes=64 * 1024 * 1024),
    )(xpad, w1r, w2r, mask)

    # Drop the 2 garbage columns per row: (B, C, H*(W+2)) -> (B, C, H, W).
    return out_flat.reshape(B, Cc, H, Wp)[:, :, :, :W]


def reference(x_nchw, w1, w2):
    """Pure-JAX f32 reference (NCHW / OIHW) matching the PyTorch forward."""
    dn = ("NCHW", "OIHW", "NCHW")
    h = jax.lax.conv_general_dilated(x_nchw, w1, (1, 1), "SAME",
                                     dimension_numbers=dn)
    h = jnp.maximum(h, 0.0)
    h = jax.lax.conv_general_dilated(h, w2, (1, 1), "SAME",
                                     dimension_numbers=dn)
    return h * 0.1 + x_nchw


if __name__ == "__main__":
    key = jax.random.PRNGKey(0)
    kx, k1, k2 = jax.random.split(key, 3)

    B, H, W = 2, 16, 16
    # PyTorch NCHW input, (2, 64, 16, 16).
    x = jax.random.normal(kx, (B, C, H, W), jnp.float32)
    # Deterministic synthetic weights, (Cout, Cin, KH, KW), no bias.
    w1 = jax.random.normal(k1, (C, C, KH, KW), jnp.float32) * 0.05
    w2 = jax.random.normal(k2, (C, C, KH, KW), jnp.float32) * 0.05

    out = jax.block_until_ready(residual_block(x, w1, w2))
    ref = reference(x, w1, w2)

    assert out.shape == (B, C, H, W)
    # bf16 MXU operands with f32 accumulation -> slightly looser than f32.
    assert jnp.allclose(out, ref, atol=2e-2, rtol=2e-2), "mismatch vs reference"

    print("KERNEL_OK")
</pallas_src>

<mosaic_0001>
module attributes {stable_mosaic.version = 11 : i64} {
  func.func @resblock_kernel(%arg0: i32, %arg1: memref<1x64x342xf32, #tpu.memory_space<vmem>>, %arg2: memref<3x64x192xbf16, #tpu.memory_space<vmem>>, %arg3: memref<3x64x192xbf16, #tpu.memory_space<vmem>>, %arg4: memref<1x288xf32, #tpu.memory_space<vmem>>, %arg5: memref<1x64x288xf32, #tpu.memory_space<vmem>>, %arg6: memref<64x342xbf16, #tpu.memory_space<vmem>>, %arg7: memref<64x342xbf16, #tpu.memory_space<vmem>>) attributes {dimension_semantics = [#tpu.dimension_semantics<parallel>], iteration_bounds = array<i64: 2>, scalar_prefetch = 0 : i64, scratch_operands = 2 : i64, tpu.core_type = #tpu.core_type<tc>, window_params = [{transform_indices = @transform_0, window_bounds = array<i64: 1, 64, 342>}, {pipeline_mode = #tpu.pipeline_mode<synchronous>, transform_indices = @transform_1, window_bounds = array<i64: 3, 64, 192>}, {pipeline_mode = #tpu.pipeline_mode<synchronous>, transform_indices = @transform_2, window_bounds = array<i64: 3, 64, 192>}, {pipeline_mode = #tpu.pipeline_mode<synchronous>, transform_indices = @transform_3, window_bounds = array<i64: 1, 288>}, {transform_indices = @transform_4, window_bounds = array<i64: 1, 64, 288>}]} {
    %c0 = arith.constant 0 : index
    %c0_0 = arith.constant 0 : index
    %c0_1 = arith.constant 0 : index
    %0 = vector.load %arg1[%c0, %c0_0, %c0_1] : memref<1x64x342xf32, #tpu.memory_space<vmem>>, vector<1x64x342xf32>
    %1 = vector.shape_cast %0 : vector<1x64x342xf32> to vector<64x342xf32>
    %2 = arith.truncf %1 : vector<64x342xf32> to vector<64x342xbf16>
    %c0_2 = arith.constant 0 : index
    %c0_3 = arith.constant 0 : index
    %3 = vector.load %arg6[%c0_2, %c0_3] : memref<64x342xbf16, #tpu.memory_space<vmem>>, vector<64x342xbf16>
    tpu.vector_store %arg6[%c0_2, %c0_3], %2 {strides = array<i32>} : memref<64x342xbf16, #tpu.memory_space<vmem>>, vector<64x342xbf16>,
    %cst = arith.constant 0.000000e+00 : f32
    %4 = vector.broadcast %cst : f32 to vector<64x288xf32>
    %c0_4 = arith.constant 0 : index
    %c0_5 = arith.constant 0 : index
    %5 = vector.load %arg6[%c0_4, %c0_5] : memref<64x342xbf16, #tpu.memory_space<vmem>>, vector<64x288xbf16>
    %c0_6 = arith.constant 0 : index
    %c1 = arith.constant 1 : index
    %6 = vector.load %arg6[%c0_6, %c1] : memref<64x342xbf16, #tpu.memory_space<vmem>>, vector<64x288xbf16>
    %c0_7 = arith.constant 0 : index
    %c2 = arith.constant 2 : index
    %7 = vector.load %arg6[%c0_7, %c2] : memref<64x342xbf16, #tpu.memory_space<vmem>>, vector<64x288xbf16>
    %8 = tpu.concatenate %5, %6, %7 in 0 : vector<64x288xbf16>, vector<64x288xbf16>, vector<64x288xbf16> -> vector<192x288xbf16>
    %c0_8 = arith.constant 0 : index
    %c0_9 = arith.constant 0 : index
    %c0_10 = arith.constant 0 : index
    %9 = vector.load %arg2[%c0_8, %c0_9, %c0_10] : memref<3x64x192xbf16, #tpu.memory_space<vmem>>, vector<1x64x192xbf16>
    %10 = vector.shape_cast %9 : vector<1x64x192xbf16> to vector<64x192xbf16>
    %cst_11 = arith.constant dense<0.000000e+00> : vector<64x288xf32>
    %11 = tpu.matmul %10, %8, %cst_11 {dimension_numbers = #tpu.dot_dimension_numbers<[1], [0], [0], [1], [0, 0, 1, 1], [], []>} : vector<64x192xbf16>, vector<192x288xbf16>, vector<64x288xf32> -> vector<64x288xf32>
    %12 = arith.addf %4, %11 : vector<64x288xf32>
    %c0_12 = arith.constant 0 : index
    %c18 = arith.constant 18 : index
    %13 = vector.load %arg6[%c0_12, %c18] : memref<64x342xbf16, #tpu.memory_space<vmem>>, vector<64x288xbf16>
    %c0_13 = arith.constant 0 : index
    %c19 = arith.constant 19 : index
    %14 = vector.load %arg6[%c0_13, %c19] : memref<64x342xbf16, #tpu.memory_space<vmem>>, vector<64x288xbf16>
    %c0_14 = arith.constant 0 : index
    %c20 = arith.constant 20 : index
    %15 = vector.load %arg6[%c0_14, %c20] : memref<64x342xbf16, #tpu.memory_space<vmem>>, vector<64x288xbf16>
    %16 = tpu.concatenate %13, %14, %15 in 0 : vector<64x288xbf16>, vector<64x288xbf16>, vector<64x288xbf16> -> vector<192x288xbf16>
    %c1_15 = arith.constant 1 : index
    %c0_16 = arith.constant 0 : index
    %c0_17 = arith.constant 0 : index
    %17 = vector.load %arg2[%c1_15, %c0_16, %c0_17] : memref<3x64x192xbf16, #tpu.memory_space<vmem>>, vector<1x64x192xbf16>
    %18 = vector.shape_cast %17 : vector<1x64x192xbf16> to vector<64x192xbf16>
    %cst_18 = arith.constant dense<0.000000e+00> : vector<64x288xf32>
    %19 = tpu.matmul %18, %16, %cst_18 {dimension_numbers = #tpu.dot_dimension_numbers<[1], [0], [0], [1], [0, 0, 1, 1], [], []>} : vector<64x192xbf16>, vector<192x288xbf16>, vector<64x288xf32> -> vector<64x288xf32>
    %20 = arith.addf %12, %19 : vector<64x288xf32>
    %c0_19 = arith.constant 0 : index
    %c36 = arith.constant 36 : index
    %21 = vector.load %arg6[%c0_19, %c36] : memref<64x342xbf16, #tpu.memory_space<vmem>>, vector<64x288xbf16>
    %c0_20 = arith.constant 0 : index
    %c37 = arith.constant 37 : index
    %22 = vector.load %arg6[%c0_20, %c37] : memref<64x342xbf16, #tpu.memory_space<vmem>>, vector<64x288xbf16>
    %c0_21 = arith.constant 0 : index
    %c38 = arith.constant 38 : index
    %23 = vector.load %arg6[%c0_21, %c38] : memref<64x342xbf16, #tpu.memory_space<vmem>>, vector<64x288xbf16>
    %24 = tpu.concatenate %21, %22, %23 in 0 : vector<64x288xbf16>, vector<64x288xbf16>, vector<64x288xbf16> -> vector<192x288xbf16>
    %c2_22 = arith.constant 2 : index
    %c0_23 = arith.constant 0 : index
    %c0_24 = arith.constant 0 : index
    %25 = vector.load %arg2[%c2_22, %c0_23, %c0_24] : memref<3x64x192xbf16, #tpu.memory_space<vmem>>, vector<1x64x192xbf16>
    %26 = vector.shape_cast %25 : vector<1x64x192xbf16> to vector<64x192xbf16>
    %cst_25 = arith.constant dense<0.000000e+00> : vector<64x288xf32>
    %27 = tpu.matmul %26, %24, %cst_25 {dimension_numbers = #tpu.dot_dimension_numbers<[1], [0], [0], [1], [0, 0, 1, 1], [], []>} : vector<64x192xbf16>, vector<192x288xbf16>, vector<64x288xf32> -> vector<64x288xf32>
    %28 = arith.addf %20, %27 : vector<64x288xf32>
    %cst_26 = arith.constant 0.000000e+00 : f32
    %29 = vector.broadcast %cst_26 : f32 to vector<64x288xf32>
    %30 = arith.maximumf %28, %29 : vector<64x288xf32>
    %cst_27 = arith.constant 0.000000e+00 : bf16
    %31 = vector.broadcast %cst_27 : bf16 to vector<64x19xbf16>
    %c0_28 = arith.constant 0 : index
    %c0_29 = arith.constant 0 : index
    %32 = vector.load %arg7[%c0_28, %c0_29] : memref<64x342xbf16, #tpu.memory_space<vmem>>, vector<64x19xbf16>
    tpu.vector_store %arg7[%c0_28, %c0_29], %31 {strides = array<i32>} : memref<64x342xbf16, #tpu.memory_space<vmem>>, vector<64x19xbf16>,
    %cst_30 = arith.constant 0.000000e+00 : bf16
    %33 = vector.broadcast %cst_30 : bf16 to vector<64x35xbf16>
    %c0_31 = arith.constant 0 : index
    %c307 = arith.constant 307 : index
    %34 = vector.load %arg7[%c0_31, %c307] : memref<64x342xbf16, #tpu.memory_space<vmem>>, vector<64x35xbf16>
    tpu.vector_store %arg7[%c0_31, %c307], %33 {strides = array<i32>} : memref<64x342xbf16, #tpu.memory_space<vmem>>, vector<64x35xbf16>,
    %c0_32 = arith.constant 0 : index
    %c0_33 = arith.constant 0 : index
    %35 = vector.load %arg4[%c0_32, %c0_33] : memref<1x288xf32, #tpu.memory_space<vmem>>, vector<1x288xf32>
    %36 = vector.broadcast %35 : vector<1x288xf32> to vector<64x288xf32>
    %37 = arith.mulf %30, %36 : vector<64x288xf32>
    %38 = arith.truncf %37 : vector<64x288xf32> to vector<64x288xbf16>
    %c0_34 = arith.constant 0 : index
    %c19_35 = arith.constant 19 : index
    %39 = vector.load %arg7[%c0_34, %c19_35] : memref<64x342xbf16, #tpu.memory_space<vmem>>, vector<64x288xbf16>
    tpu.vector_store %arg7[%c0_34, %c19_35], %38 {strides = array<i32>} : memref<64x342xbf16, #tpu.memory_space<vmem>>, vector<64x288xbf16>,
    %cst_36 = arith.constant 0.000000e+00 : f32
    %40 = vector.broadcast %cst_36 : f32 to vector<64x288xf32>
    %c0_37 = arith.constant 0 : index
    %c0_38 = arith.constant 0 : index
    %41 = vector.load %arg7[%c0_37, %c0_38] : memref<64x342xbf16, #tpu.memory_space<vmem>>, vector<64x288xbf16>
    %c0_39 = arith.constant 0 : index
    %c1_40 = arith.constant 1 : index
    %42 = vector.load %arg7[%c0_39, %c1_40] : memref<64x342xbf16, #tpu.memory_space<vmem>>, vector<64x288xbf16>
    %c0_41 = arith.constant 0 : index
    %c2_42 = arith.constant 2 : index
    %43 = vector.load %arg7[%c0_41, %c2_42] : memref<64x342xbf16, #tpu.memory_space<vmem>>, vector<64x288xbf16>
    %44 = tpu.concatenate %41, %42, %43 in 0 : vector<64x288xbf16>, vector<64x288xbf16>, vector<64x288xbf16> -> vector<192x288xbf16>
    %c0_43 = arith.constant 0 : index
    %c0_44 = arith.constant 0 : index
    %c0_45 = arith.constant 0 : index
    %45 = vector.load %arg3[%c0_43, %c0_44, %c0_45] : memref<3x64x192xbf16, #tpu.memory_space<vmem>>, vector<1x64x192xbf16>
    %46 = vector.shape_cast %45 : vector<1x64x192xbf16> to vector<64x192xbf16>
    %cst_46 = arith.constant dense<0.000000e+00> : vector<64x288xf32>
    %47 = tpu.matmul %46, %44, %cst_46 {dimension_numbers = #tpu.dot_dimension_numbers<[1], [0], [0], [1], [0, 0, 1, 1], [], []>} : vector<64x192xbf16>, vector<192x288xbf16>, vector<64x288xf32> -> vector<64x288xf32>
    %48 = arith.addf %40, %47 : vector<64x288xf32>
    %c0_47 = arith.constant 0 : index
    %c18_48 = arith.constant 18 : index
    %49 = vector.load %arg7[%c0_47, %c18_48] : memref<64x342xbf16, #tpu.memory_space<vmem>>, vector<64x288xbf16>
    %c0_49 = arith.constant 0 : index
    %c19_50 = arith.constant 19 : index
    %50 = vector.load %arg7[%c0_49, %c19_50] : memref<64x342xbf16, #tpu.memory_space<vmem>>, vector<64x288xbf16>
    %c0_51 = arith.constant 0 : index
    %c20_52 = arith.constant 20 : index
    %51 = vector.load %arg7[%c0_51, %c20_52] : memref<64x342xbf16, #tpu.memory_space<vmem>>, vector<64x288xbf16>
    %52 = tpu.concatenate %49, %50, %51 in 0 : vector<64x288xbf16>, vector<64x288xbf16>, vector<64x288xbf16> -> vector<192x288xbf16>
    %c1_53 = arith.constant 1 : index
    %c0_54 = arith.constant 0 : index
    %c0_55 = arith.constant 0 : index
    %53 = vector.load %arg3[%c1_53, %c0_54, %c0_55] : memref<3x64x192xbf16, #tpu.memory_space<vmem>>, vector<1x64x192xbf16>
    %54 = vector.shape_cast %53 : vector<1x64x192xbf16> to vector<64x192xbf16>
    %cst_56 = arith.constant dense<0.000000e+00> : vector<64x288xf32>
    %55 = tpu.matmul %54, %52, %cst_56 {dimension_numbers = #tpu.dot_dimension_numbers<[1], [0], [0], [1], [0, 0, 1, 1], [], []>} : vector<64x192xbf16>, vector<192x288xbf16>, vector<64x288xf32> -> vector<64x288xf32>
    %56 = arith.addf %48, %55 : vector<64x288xf32>
    %c0_57 = arith.constant 0 : index
    %c36_58 = arith.constant 36 : index
    %57 = vector.load %arg7[%c0_57, %c36_58] : memref<64x342xbf16, #tpu.memory_space<vmem>>, vector<64x288xbf16>
    %c0_59 = arith.constant 0 : index
    %c37_60 = arith.constant 37 : index
    %58 = vector.load %arg7[%c0_59, %c37_60] : memref<64x342xbf16, #tpu.memory_space<vmem>>, vector<64x288xbf16>
    %c0_61 = arith.constant 0 : index
    %c38_62 = arith.constant 38 : index
    %59 = vector.load %arg7[%c0_61, %c38_62] : memref<64x342xbf16, #tpu.memory_space<vmem>>, vector<64x288xbf16>
    %60 = tpu.concatenate %57, %58, %59 in 0 : vector<64x288xbf16>, vector<64x288xbf16>, vector<64x288xbf16> -> vector<192x288xbf16>
    %c2_63 = arith.constant 2 : index
    %c0_64 = arith.constant 0 : index
    %c0_65 = arith.constant 0 : index
    %61 = vector.load %arg3[%c2_63, %c0_64, %c0_65] : memref<3x64x192xbf16, #tpu.memory_space<vmem>>, vector<1x64x192xbf16>
    %62 = vector.shape_cast %61 : vector<1x64x192xbf16> to vector<64x192xbf16>
    %cst_66 = arith.constant dense<0.000000e+00> : vector<64x288xf32>
    %63 = tpu.matmul %62, %60, %cst_66 {dimension_numbers = #tpu.dot_dimension_numbers<[1], [0], [0], [1], [0, 0, 1, 1], [], []>} : vector<64x192xbf16>, vector<192x288xbf16>, vector<64x288xf32> -> vector<64x288xf32>
    %64 = arith.addf %56, %63 : vector<64x288xf32>
    %c0_67 = arith.constant 0 : index
    %c0_68 = arith.constant 0 : index
    %c19_69 = arith.constant 19 : index
    %65 = vector.load %arg1[%c0_67, %c0_68, %c19_69] : memref<1x64x342xf32, #tpu.memory_space<vmem>>, vector<1x64x288xf32>
    %66 = vector.shape_cast %65 : vector<1x64x288xf32> to vector<64x288xf32>
    %67 = arith.addf %64, %66 : vector<64x288xf32>
    %c0_70 = arith.constant 0 : index
    %c0_71 = arith.constant 0 : index
    %c0_72 = arith.constant 0 : index
    %68 = vector.load %arg5[%c0_70, %c0_71, %c0_72] : memref<1x64x288xf32, #tpu.memory_space<vmem>>, vector<1x64x288xf32>
    %69 = vector.shape_cast %68 : vector<1x64x288xf32> to vector<64x288xf32>
    %70 = vector.shape_cast %67 : vector<64x288xf32> to vector<1x64x288xf32>
    tpu.vector_store %arg5[%c0_70, %c0_71, %c0_72], %70 {strides = array<i32>} : memref<1x64x288xf32, #tpu.memory_space<vmem>>, vector<1x64x288xf32>,
    return
  }
  func.func @transform_0(%arg0: i32) -> (i32, i32, i32) {
    %c0_i32 = arith.constant 0 : i32
    %c0_i32_0 = arith.constant 0 : i32
    %c0_i32_1 = arith.constant 0 : i32
    return %arg0, %c0_i32, %c0_i32_0 : i32, i32, i32
  }
  func.func @transform_1(%arg0: i32) -> (i32, i32, i32) {
    %c0_i32 = arith.constant 0 : i32
    %c0_i32_0 = arith.constant 0 : i32
    %c0_i32_1 = arith.constant 0 : i32
    %c0_i32_2 = arith.constant 0 : i32
    return %c0_i32, %c0_i32_0, %c0_i32_1 : i32, i32, i32
  }
  func.func @transform_2(%arg0: i32) -> (i32, i32, i32) {
    %c0_i32 = arith.constant 0 : i32
    %c0_i32_0 = arith.constant 0 : i32
    %c0_i32_1 = arith.constant 0 : i32
    %c0_i32_2 = arith.constant 0 : i32
    return %c0_i32, %c0_i32_0, %c0_i32_1 : i32, i32, i32
  }
  func.func @transform_3(%arg0: i32) -> (i32, i32) {
    %c0_i32 = arith.constant 0 : i32
    %c0_i32_0 = arith.constant 0 : i32
    %c0_i32_1 = arith.constant 0 : i32
    return %c0_i32, %c0_i32_0 : i32, i32
  }
  func.func @transform_4(%arg0: i32) -> (i32, i32, i32) {
    %c0_i32 = arith.constant 0 : i32
    %c0_i32_0 = arith.constant 0 : i32
    %c0_i32_1 = arith.constant 0 : i32
    return %arg0, %c0_i32, %c0_i32_0 : i32, i32, i32
  }
}

</mosaic_0001>

<llo_original>
// kernel: tpu_custom_call.1
$region0: #{tpu_custom_call.1}
  #allocation0 [shape = 'u32[]', space=smem, size = 0x4, offset = 0x4, fixed_abs, tag = 'smem constant byte address 0x4 - core index']
  #allocation1 [shape = 'u32[144,128]{1,0:T(1,128)}', space=vmem, size = 0x12000, scoped, tag = 'internal scratch']
  #allocation2 [shape = 'bf16[64,342]{1,0:T(16,128)(2,1)}', space=vmem, size = 0xc000, scoped, tag = 'scratch operand']
  #allocation3 [shape = 'bf16[64,342]{1,0:T(16,128)(2,1)}', space=vmem, size = 0xc000, scoped, tag = 'scratch operand']
  %s0 = inlined_call_operand.hbm [shape: f32[2,64,342], index: 0, kind: input, shape index: {}]
  %s1 = inlined_call_operand.hbm [shape: bf16[3,64,192], index: 1, kind: input, shape index: {}]
  %s2 = inlined_call_operand.hbm [shape: bf16[3,64,192], index: 2, kind: input, shape index: {}]
  %s3 = inlined_call_operand.hbm [shape: f32[1,288], index: 3, kind: input, shape index: {}]
  %s4 = inlined_call_operand.hbm [shape: f32[2,64,288], index: 4, kind: output, shape index: {}]
  %s5 = sld [smem:[#allocation0]]
  $region65: #{tpu_custom_call.1} parent=0
    _
  %s7 = ssub.s32 1, %s5
  %s8 = scalar_select 0, %s7, %s5
  $region1: #{tpu_custom_call.1} parent=0
    #allocation4 [shape = 'u8[196608]{0}', space=vmem, size = 0x30000, scoped, tag = 'input window, operand 0']
    #allocation5 [shape = 's32[2]{0}', space=sflag, size = 0x8, scoped, tag = 'scoped memory for tpu_custom_call.1']
    #allocation6 [shape = 's32[2]{0}', space=sflag, size = 0x8, scoped, tag = 'scoped memory for tpu_custom_call.1']
    #allocation7 [shape = 'u8[98304]{0}', space=vmem, size = 0x18000, scoped, tag = 'input window, operand 1, single buffered']
    #allocation8 [shape = 's32[1]{0}', space=sflag, size = 0x4, scoped, tag = 'scoped memory for tpu_custom_call.1']
    #allocation9 [shape = 'u8[98304]{0}', space=vmem, size = 0x18000, scoped, tag = 'input window, operand 2, single buffered']
    #allocation10 [shape = 'u8[1536]{0}', space=vmem, size = 0x800, scoped, tag = 'input window, operand 3, single buffered']
    #allocation11 [shape = 's32[1]{0}', space=sflag, size = 0x4, scoped, tag = 'scoped memory for tpu_custom_call.1']
    #allocation12 [shape = 'u8[196608]{0}', space=vmem, size = 0x30000, scoped, tag = 'output window, operand 0']
    %9 = vsyncpa [#allocation5], 0
    %s10 = scalar_lea.sflag [#allocation5], 1
    %11 = vsyncpa %s10, 0
    %12 = vsyncpa [#allocation8], 0
    %13 = vsyncpa [#allocation11], 0
    %14 = vsyncpa [#allocation6], 0
    %s15 = scalar_lea.sflag [#allocation6], 1
    %16 = vsyncpa %s15, 0
    loop: start=0, step=1, limit=4
    $region2: #{tpu_custom_call.1} parent=1 // loop_pre_header
      _
    $region3: #{tpu_custom_call.1} parent=1 // loop_header
      %s18 = sphi 0, %s22
      %p19 = scmp.ge.s32.totalorder %s18, 4
      %s28 = sphi 0, %s30
      %s31 = sphi 0, %s28
      %s32 = sphi 0, %s31
      %s48 = sphi 0, %s32
      %s52 = sphi 0, %s52
      %s54 = sphi 0, %s52
      %s55 = sphi 0, %s54
      %s69 = sphi 0, %s55
      %s73 = sphi 0, %s73
      %s75 = sphi 0, %s73
      %s76 = sphi 0, %s75
      %s90 = sphi 0, %s76
      %s94 = sphi 0, %s94
      %s96 = sphi 0, %s94
      %s97 = sphi 0, %s96
      %s111 = sphi 0, %s97
      %s117 = sphi 0, %s119
      %s120 = sphi 0, %s117
      %s121 = sphi 0, %s120
      %s137 = sphi 0, %s121
    $region4: #{tpu_custom_call.1} parent=1 // loop_header_branch
      %21 = sbr.rel (%p19) target = $region8
    $region5: #{tpu_custom_call.1} parent=1 // loop_body
      %s23 = ssub.s32 %s18, 1
      %s24 = ssub.s32 %s18, 2
      %s25 = sadd.s32 %s18, 1
      %s26 = ssub.s32 %s18, %s25
      %p27 = scmp.eq.s32.totalorder %s26, 0
      %s29 = sadd.s32 %s28, 1
      %s30 = scalar_select %p27, %s28, %s29
      %p33 = pneg %p27
      %p34 = scmp.eq.s32.totalorder %s18, 1
      %p35 = por %p33, %p34
      %p36 = scmp.ne.s32.totalorder %s28, %s31
      %p37 = scmp.eq.s32.totalorder %s18, 0
      %p38 = por %p36, %p37
      %p39 = scmp.ne.s32.totalorder %s28, %s31
      %p40 = scmp.eq.s32.totalorder %s23, 1
      %p41 = por %p39, %p40
      %p42 = scmp.ne.s32.totalorder %s31, %s32
      %p43 = scmp.eq.s32.totalorder %s23, 0
      %p44 = por %p42, %p43
      %p45 = scmp.ne.s32.totalorder %s31, %s32
      %p46 = scmp.eq.s32.totalorder %s24, 1
      %p47 = por %p45, %p46
      %p49 = scmp.ne.s32.totalorder %s32, %s48
      %p50 = scmp.eq.s32.totalorder %s24, 0
      %p51 = por %p49, %p50
      %s53 = sadd.s32 %s52, 1
      %p56 = scmp.eq.s32.totalorder %s18, 1
      %p57 = scmp.ne.s32.totalorder %s52, %s54
      %p58 = scmp.eq.s32.totalorder %s18, 0
      %p59 = por %p57, %p58
      %p60 = scmp.ne.s32.totalorder %s52, %s54
      %p61 = scmp.eq.s32.totalorder %s23, 1
      %p62 = por %p60, %p61
      %p63 = scmp.ne.s32.totalorder %s54, %s55
      %p64 = scmp.eq.s32.totalorder %s23, 0
      %p65 = por %p63, %p64
      %p66 = scmp.ne.s32.totalorder %s54, %s55
      %p67 = scmp.eq.s32.totalorder %s24, 1
      %p68 = por %p66, %p67
      %p70 = scmp.ne.s32.totalorder %s55, %s69
      %p71 = scmp.eq.s32.totalorder %s24, 0
      %p72 = por %p70, %p71
      %s74 = sadd.s32 %s73, 1
      %p77 = scmp.eq.s32.totalorder %s18, 1
      %p78 = scmp.ne.s32.totalorder %s73, %s75
      %p79 = scmp.eq.s32.totalorder %s18, 0
      %p80 = por %p78, %p79
      %p81 = scmp.ne.s32.totalorder %s73, %s75
      %p82 = scmp.eq.s32.totalorder %s23, 1
      %p83 = por %p81, %p82
      %p84 = scmp.ne.s32.totalorder %s75, %s76
      %p85 = scmp.eq.s32.totalorder %s23, 0
      %p86 = por %p84, %p85
      %p87 = scmp.ne.s32.totalorder %s75, %s76
      %p88 = scmp.eq.s32.totalorder %s24, 1
      %p89 = por %p87, %p88
      %p91 = scmp.ne.s32.totalorder %s76, %s90
      %p92 = scmp.eq.s32.totalorder %s24, 0
      %p93 = por %p91, %p92
      %s95 = sadd.s32 %s94, 1
      %p98 = scmp.eq.s32.totalorder %s18, 1
      %p99 = scmp.ne.s32.totalorder %s94, %s96
      %p100 = scmp.eq.s32.totalorder %s18, 0
      %p101 = por %p99, %p100
      %p102 = scmp.ne.s32.totalorder %s94, %s96
      %p103 = scmp.eq.s32.totalorder %s23, 1
      %p104 = por %p102, %p103
      %p105 = scmp.ne.s32.totalorder %s96, %s97
      %p106 = scmp.eq.s32.totalorder %s23, 0
      %p107 = por %p105, %p106
      %p108 = scmp.ne.s32.totalorder %s96, %s97
      %p109 = scmp.eq.s32.totalorder %s24, 1
      %p110 = por %p108, %p109
      %p112 = scmp.ne.s32.totalorder %s97, %s111
      %p113 = scmp.eq.s32.totalorder %s24, 0
      %p114 = por %p112, %p113
      %s115 = ssub.s32 %s18, %s25
      %p116 = scmp.eq.s32.totalorder %s115, 0
      %s118 = sadd.s32 %s117, 1
      %s119 = scalar_select %p116, %s117, %s118
      %p122 = pneg %p116
      %p123 = scmp.eq.s32.totalorder %s18, 1
      %p124 = por %p122, %p123
      %p125 = scmp.ne.s32.totalorder %s117, %s120
      %p126 = scmp.eq.s32.totalorder %s18, 0
      %p127 = por %p125, %p126
      %p128 = scmp.ne.s32.totalorder %s117, %s120
      %p129 = scmp.eq.s32.totalorder %s23, 1
      %p130 = por %p128, %p129
      %p131 = scmp.ne.s32.totalorder %s120, %s121
      %p132 = scmp.eq.s32.totalorder %s23, 0
      %p133 = por %p131, %p132
      %p134 = scmp.ne.s32.totalorder %s120, %s121
      %p135 = scmp.eq.s32.totalorder %s24, 1
      %p136 = por %p134, %p135
      %p138 = scmp.ne.s32.totalorder %s121, %s137
      %p139 = scmp.eq.s32.totalorder %s24, 0
      %p140 = por %p138, %p139
      %p141 = scmp.le.s32.totalorder 1, %s18
      %p142 = scmp.lt.s32.totalorder %s18, 3
      %p143 = pnand %p141, %p142
      %p144 = pneg %p143
      // Predicated region
      $region9: #{tpu_custom_call.1} parent=5 // pred_check
        _
      $region10: #{tpu_custom_call.1} parent=5 // pred_check_branch
        %146 = sbr.rel (%p143) target = $region12
      $region11: #{tpu_custom_call.1} parent=5 // pred_region
        %s147 = ssub.s32 %s18, 1
        // Predicated region
        $region13: #{tpu_custom_call.1} parent=11 // pred_check
          %p148 = pneg %p65
        $region14: #{tpu_custom_call.1} parent=11 // pred_check_branch
          %150 = sbr.rel (%p148) target = $region16
        $region15: #{tpu_custom_call.1} parent=11 // pred_region
          %s152 = ssub.s32 3072, 3072
          %153 = vsyncadd [#allocation8], %s152
          %s154 = sshll.u32 [#allocation7], 4
          %s155 = int_to_ptr.vmem [resolvable:$true] %s154
          %160 = dma.hbm_to_vmem [thread:$0]  %s1, 3072, %s155, [#allocation8], 128, 128, 8
        $region16: #{tpu_custom_call.1} parent=11 // pred_fallthru
          _
        // Predicated region
        $region17: #{tpu_custom_call.1} parent=11 // pred_check
          %p161 = pneg %p86
        $region18: #{tpu_custom_call.1} parent=11 // pred_check_branch
          %163 = sbr.rel (%p161) target = $region20
        $region19: #{tpu_custom_call.1} parent=11 // pred_region
          %s165 = ssub.s32 3072, 3072
          %166 = vsyncadd [#allocation8], %s165
          %s167 = sshll.u32 [#allocation9], 4
          %s168 = int_to_ptr.vmem [resolvable:$true] %s167
          %173 = dma.hbm_to_vmem [thread:$0]  %s2, 3072, %s168, [#allocation8], 128, 128, 8
        $region20: #{tpu_custom_call.1} parent=11 // pred_fallthru
          _
        // Predicated region
        $region21: #{tpu_custom_call.1} parent=11 // pred_check
          %p174 = pneg %p107
        $region22: #{tpu_custom_call.1} parent=11 // pred_check_branch
          %176 = sbr.rel (%p174) target = $region24
        $region23: #{tpu_custom_call.1} parent=11 // pred_region
          %s178 = ssub.s32 48, 48
          %179 = vsyncadd [#allocation11], %s178
          %s181 = sshll.u32 [#allocation10], 4
          %s182 = int_to_ptr.vmem [resolvable:$true] %s181
          %184 = dma.hbm_to_vmem [thread:$0]  %s3, 48, %s182, [#allocation11]
        $region24: #{tpu_custom_call.1} parent=11 // pred_fallthru
          _
      $region12: #{tpu_custom_call.1} parent=5 // pred_fallthru
        _
      %p185 = scmp.lt.s32.totalorder %s18, 2
      // Predicated region
      $region25: #{tpu_custom_call.1} parent=5 // pred_check
        %p186 = pneg %p185
      $region26: #{tpu_custom_call.1} parent=5 // pred_check_branch
        %188 = sbr.rel (%p186) target = $region28
      $region27: #{tpu_custom_call.1} parent=5 // pred_region
        // Predicated region
        $region29: #{tpu_custom_call.1} parent=27 // pred_check
          %p189 = pneg %p38
        $region30: #{tpu_custom_call.1} parent=27 // pred_check_branch
          %191 = sbr.rel (%p189) target = $region32
        $region31: #{tpu_custom_call.1} parent=27 // pred_region
          %s192 = sand.u32 %s28, 1
          %s193 = scalar_lea.sflag [#allocation5], %s192
          %s194 = sand.u32 %s28, 1
          %s195 = smul.addr %s194, 192
          %s196 = scalar_lea.vmem [#allocation4], %s195
          %s198 = ssub.s32 3072, 3072
          %199 = vsyncadd %s193, %s198
          %s200 = smul.addr %s18, 24
          %s201 = smul.addr %s200, 128
          %s202 = scalar_lea.hbm %s0, %s201
          %s203 = sshll.u32 %s196, 4
          %s204 = int_to_ptr.vmem [resolvable:$true] %s203
          %209 = dma.hbm_to_vmem [thread:$0]  %s202, 3072, %s204, %s193, 384, 384, 24
        $region32: #{tpu_custom_call.1} parent=27 // pred_fallthru
          _
      $region28: #{tpu_custom_call.1} parent=5 // pred_fallthru
        _
      %p210 = scmp.le.s32.totalorder 1, %s18
      %p211 = scmp.lt.s32.totalorder %s18, 3
      %p212 = pnand %p210, %p211
      %p213 = pneg %p212
      // Predicated region
      $region33: #{tpu_custom_call.1} parent=5 // pred_check
        _
      $region34: #{tpu_custom_call.1} parent=5 // pred_check_branch
        %215 = sbr.rel (%p212) target = $region36
      $region35: #{tpu_custom_call.1} parent=5 // pred_region
        %s216 = ssub.s32 %s18, 1
        %s217 = sand.u32 %s31, 1
        %s218 = scalar_lea.sflag [#allocation5], %s217
        %s219 = sand.u32 %s31, 1
        %s220 = smul.addr %s219, 192
        %s221 = scalar_lea.vmem [#allocation4], %s220
        // Predicated region
        $region37: #{tpu_custom_call.1} parent=35 // pred_check
          %p222 = pneg %p44
        $region38: #{tpu_custom_call.1} parent=35 // pred_check_branch
          %224 = sbr.rel (%p222) target = $region40
        $region39: #{tpu_custom_call.1} parent=35 // pred_region
          %225 = dma.done %s218, 3072
        $region40: #{tpu_custom_call.1} parent=35 // pred_fallthru
          _
        // Predicated region
        $region41: #{tpu_custom_call.1} parent=35 // pred_check
          %p226 = pneg %p65
        $region42: #{tpu_custom_call.1} parent=35 // pred_check_branch
          %228 = sbr.rel (%p226) target = $region44
        $region43: #{tpu_custom_call.1} parent=35 // pred_region
          %229 = dma.done [#allocation8], 3072
        $region44: #{tpu_custom_call.1} parent=35 // pred_fallthru
          _
        // Predicated region
        $region45: #{tpu_custom_call.1} parent=35 // pred_check
          %p230 = pneg %p86
        $region46: #{tpu_custom_call.1} parent=35 // pred_check_branch
          %232 = sbr.rel (%p230) target = $region48
        $region47: #{tpu_custom_call.1} parent=35 // pred_region
          %233 = dma.done [#allocation8], 3072
        $region48: #{tpu_custom_call.1} parent=35 // pred_fallthru
          _
        // Predicated region
        $region49: #{tpu_custom_call.1} parent=35 // pred_check
          %p234 = pneg %p107
        $region50: #{tpu_custom_call.1} parent=35 // pred_check_branch
          %236 = sbr.rel (%p234) target = $region52
        $region51: #{tpu_custom_call.1} parent=35 // pred_region
          %237 = dma.done [#allocation11], 48
        $region52: #{tpu_custom_call.1} parent=35 // pred_fallthru
          _
        %s238 = sand.u32 %s31, 1
        %s239 = scalar_lea.sflag [#allocation5], %s238
        %s240 = sand.u32 %s31, 1
        %s241 = smul.addr %s240, 192
        %s242 = scalar_lea.vmem [#allocation4], %s241
        %p243 = pneg %p44
        %p244 = pneg %p41
        %p245 = pneg %p65
        %p246 = pneg %p62
        %p247 = pneg %p86
        %p248 = pneg %p83
        %p249 = pneg %p107
        %p250 = pneg %p104
        %p251 = pneg %p133
        %p252 = pneg %p130
        %s253 = sand.u32 %s120, 1
        %s254 = scalar_lea.sflag [#allocation6], %s253
        %s255 = sand.u32 %s120, 1
        %s256 = smul.addr %s255, 192
        %s257 = scalar_lea.vmem [#allocation12], %s256
        %v259 = vld [vmem:[%s221] sm:$0xff]
        %v260 = vld [vmem:[%s221 + $0x8] sm:$0xff]
        %v261 = vld [vmem:[%s221 + $0x10] sm:$0xff]
        %v262 = vld [vmem:[%s221 + $0x18] sm:$0xff]
        %v263 = vld [vmem:[%s221 + $0x20] sm:$0xff]
        %v264 = vld [vmem:[%s221 + $0x28] sm:$0xff]
        %v265 = vld [vmem:[%s221 + $0x30] sm:$0xff]
        %v266 = vld [vmem:[%s221 + $0x38] sm:$0xff]
        %v267 = vld [vmem:[%s221 + $0x40] sm:$0xff]
        %v268 = vld [vmem:[%s221 + $0x48] sm:$0xff]
        %v269 = vld [vmem:[%s221 + $0x50] sm:$0xff]
        %v270 = vld [vmem:[%s221 + $0x58] sm:$0xff]
        %v271 = vld [vmem:[%s221 + $0x60] sm:$0xff]
        %v272 = vld [vmem:[%s221 + $0x68] sm:$0xff]
        %v273 = vld [vmem:[%s221 + $0x70] sm:$0xff]
        %v274 = vld [vmem:[%s221 + $0x78] sm:$0xff]
        %v275 = vld [vmem:[%s221 + $0x80] sm:$0xff]
        %v276 = vld [vmem:[%s221 + $0x88] sm:$0xff]
        %v277 = vld [vmem:[%s221 + $0x90] sm:$0xff]
        %v278 = vld [vmem:[%s221 + $0x98] sm:$0xff]
        %v279 = vld [vmem:[%s221 + $0xa0] sm:$0xff]
        %v280 = vld [vmem:[%s221 + $0xa8] sm:$0xff]
        %v281 = vld [vmem:[%s221 + $0xb0] sm:$0xff]
        %v282 = vld [vmem:[%s221 + $0xb8] sm:$0xff]
        %v283 = vpack.c.bf16 %v262, %v259
        %v284 = vpack.c.bf16 %v263, %v260
        %v285 = vpack.c.bf16 %v264, %v261
        %v286 = vpack.c.bf16 %v268, %v265
        %v287 = vpack.c.bf16 %v269, %v266
        %v288 = vpack.c.bf16 %v270, %v267
        %v289 = vpack.c.bf16 %v274, %v271
        %v290 = vpack.c.bf16 %v275, %v272
        %v291 = vpack.c.bf16 %v276, %v273
        %v292 = vpack.c.bf16 %v280, %v277
        %v293 = vpack.c.bf16 %v281, %v278
        %v294 = vpack.c.bf16 %v282, %v279
        %295 = vst [vmem:[#allocation2] sm:$0xff] %v283
        %296 = vst [vmem:[#allocation2 + $0x8] sm:$0xff] %v284
        %vm297 = vcmask 703488
        %298 = vst.msk [vmem:[#allocation2 + $0x10] sm:$0xff] %vm297, %v285
        %299 = vst [vmem:[#allocation2 + $0x18] sm:$0xff] %v286
        %300 = vst [vmem:[#allocation2 + $0x20] sm:$0xff] %v287
        %301 = vst.msk [vmem:[#allocation2 + $0x28] sm:$0xff] %vm297, %v288
        %302 = vst [vmem:[#allocation2 + $0x30] sm:$0xff] %v289
        %303 = vst [vmem:[#allocation2 + $0x38] sm:$0xff] %v290
        %304 = vst.msk [vmem:[#allocation2 + $0x40] sm:$0xff] %vm297, %v291
        %305 = vst [vmem:[#allocation2 + $0x48] sm:$0xff] %v292
        %306 = vst [vmem:[#allocation2 + $0x50] sm:$0xff] %v293
        %307 = vst.msk [vmem:[#allocation2 + $0x58] sm:$0xff] %vm297, %v294
        %v308 = vld [vmem:[#allocation2] sm:$0xff]
        %v309 = vld [vmem:[#allocation2 + $0x8] sm:$0xff]
        %v310 = vld [vmem:[#allocation2 + $0x10] sm:$0xff]
        %v311 = vld [vmem:[#allocation2 + $0x18] sm:$0xff]
        %v312 = vld [vmem:[#allocation2 + $0x20] sm:$0xff]
        %v313 = vld [vmem:[#allocation2 + $0x28] sm:$0xff]
        %v314 = vld [vmem:[#allocation2 + $0x30] sm:$0xff]
        %v315 = vld [vmem:[#allocation2 + $0x38] sm:$0xff]
        %v316 = vld [vmem:[#allocation2 + $0x40] sm:$0xff]
        %v317 = vld [vmem:[#allocation2 + $0x48] sm:$0xff]
        %v318 = vld [vmem:[#allocation2 + $0x50] sm:$0xff]
        %v319 = vld [vmem:[#allocation2 + $0x58] sm:$0xff]
        %332 = vrot.lane.b32.xlu0 %v308, 127
        %v333 = vpop.permute.xlu0 %332
        %334 = vrot.lane.b32.xlu0 %v309, 127
        %v335 = vpop.permute.xlu0 %334
        %336 = vrot.lane.b32.xlu0 %v310, 127
        %v337 = vpop.permute.xlu0 %336
        %338 = vrot.lane.b32.xlu0 %v311, 127
        %v339 = vpop.permute.xlu0 %338
        %340 = vrot.lane.b32.xlu0 %v312, 127
        %v341 = vpop.permute.xlu0 %340
        %342 = vrot.lane.b32.xlu0 %v313, 127
        %v343 = vpop.permute.xlu0 %342
        %344 = vrot.lane.b32.xlu0 %v314, 127
        %v345 = vpop.permute.xlu0 %344
        %346 = vrot.lane.b32.xlu0 %v315, 127
        %v347 = vpop.permute.xlu0 %346
        %348 = vrot.lane.b32.xlu0 %v316, 127
        %v349 = vpop.permute.xlu0 %348
        %350 = vrot.lane.b32.xlu0 %v317, 127
        %v351 = vpop.permute.xlu0 %350
        %352 = vrot.lane.b32.xlu0 %v318, 127
        %v353 = vpop.permute.xlu0 %352
        %354 = vrot.lane.b32.xlu0 %v319, 127
        %v355 = vpop.permute.xlu0 %354
        %vm356 = vcmask 1039360
        %v357 = vsel %vm356, %v333, %v335
        %v358 = vsel %vm356, %v335, %v337
        %v359 = vsel %vm356, %v339, %v341
        %v360 = vsel %vm356, %v341, %v343
        %v361 = vsel %vm356, %v345, %v347
        %v362 = vsel %vm356, %v347, %v349
        %v363 = vsel %vm356, %v351, %v353
        %v364 = vsel %vm356, %v353, %v355
        %377 = vrot.lane.b32.xlu0 %v308, 126
        %v378 = vpop.permute.xlu0 %377
        %379 = vrot.lane.b32.xlu0 %v309, 126
        %v380 = vpop.permute.xlu0 %379
        %381 = vrot.lane.b32.xlu0 %v310, 126
        %v382 = vpop.permute.xlu0 %381
        %383 = vrot.lane.b32.xlu0 %v311, 126
        %v384 = vpop.permute.xlu0 %383
        %385 = vrot.lane.b32.xlu0 %v312, 126
        %v386 = vpop.permute.xlu0 %385
        %387 = vrot.lane.b32.xlu0 %v313, 126
        %v388 = vpop.permute.xlu0 %387
        %389 = vrot.lane.b32.xlu0 %v314, 126
        %v390 = vpop.permute.xlu0 %389
        %391 = vrot.lane.b32.xlu0 %v315, 126
        %v392 = vpop.permute.xlu0 %391
        %393 = vrot.lane.b32.xlu0 %v316, 126
        %v394 = vpop.permute.xlu0 %393
        %395 = vrot.lane.b32.xlu0 %v317, 126
        %v396 = vpop.permute.xlu0 %395
        %397 = vrot.lane.b32.xlu0 %v318, 126
        %v398 = vpop.permute.xlu0 %397
        %399 = vrot.lane.b32.xlu0 %v319, 126
        %v400 = vpop.permute.xlu0 %399
        %vm401 = vcmask 1031168
        %v402 = vsel %vm401, %v378, %v380
        %v403 = vsel %vm401, %v380, %v382
        %v404 = vsel %vm401, %v384, %v386
        %v405 = vsel %vm401, %v386, %v388
        %v406 = vsel %vm401, %v390, %v392
        %v407 = vsel %vm401, %v392, %v394
        %v408 = vsel %vm401, %v396, %v398
        %v409 = vsel %vm401, %v398, %v400
        %v422 = vld [vmem:[#allocation7] sm:$0xff]
        %v423 = vld [vmem:[#allocation7 + $0x8] sm:$0xff]
        %v424 = vld [vmem:[#allocation7 + $0x10] sm:$0xff]
        %v425 = vld [vmem:[#allocation7 + $0x18] sm:$0xff]
        %v426 = vld [vmem:[#allocation7 + $0x20] sm:$0xff]
        %v427 = vld [vmem:[#allocation7 + $0x28] sm:$0xff]
        %v428 = vld [vmem:[#allocation7 + $0x30] sm:$0xff]
        %v429 = vld [vmem:[#allocation7 + $0x38] sm:$0xff]
        %s430 = scalar_lea.vmem [#allocation7], 64
        %v431 = vld [vmem:[%s430] sm:$0xff]
        %v432 = vld [vmem:[%s430 + $0x8] sm:$0xff]
        %v433 = vld [vmem:[%s430 + $0x10] sm:$0xff]
        %v434 = vld [vmem:[%s430 + $0x18] sm:$0xff]
        %v435 = vld [vmem:[%s430 + $0x20] sm:$0xff]
        %v436 = vld [vmem:[%s430 + $0x28] sm:$0xff]
        %v437 = vld [vmem:[%s430 + $0x30] sm:$0xff]
        %v438 = vld [vmem:[%s430 + $0x38] sm:$0xff]
        %v447 = vunpack.c.l.b16 %v431
        %v448 = vunpack.c.h.b16 %v431
        %v449 = vunpack.c.l.b16 %v432
        %v450 = vunpack.c.h.b16 %v432
        %v451 = vunpack.c.l.b16 %v433
        %v452 = vunpack.c.h.b16 %v433
        %v453 = vunpack.c.l.b16 %v434
        %v454 = vunpack.c.h.b16 %v434
        %v455 = vunpack.c.l.b16 %v435
        %v456 = vunpack.c.h.b16 %v435
        %v457 = vunpack.c.l.b16 %v436
        %v458 = vunpack.c.h.b16 %v436
        %v459 = vunpack.c.l.b16 %v437
        %v460 = vunpack.c.h.b16 %v437
        %v461 = vunpack.c.l.b16 %v438
        %v462 = vunpack.c.h.b16 %v438
        %v463 = vpack.c.b16 %v449, %v447
        %v464 = vpack.c.b16 %v450, %v448
        %v465 = vpack.c.b16 %v453, %v451
        %v466 = vpack.c.b16 %v454, %v452
        %v467 = vpack.c.b16 %v457, %v455
        %v468 = vpack.c.b16 %v458, %v456
        %v469 = vpack.c.b16 %v461, %v459
        %v470 = vpack.c.b16 %v462, %v460
        %475 = vrot.lane.b32.xlu0 %v308, 110
        %v476 = vpop.permute.xlu0 %475
        %477 = vrot.lane.b32.xlu0 %v309, 110
        %v478 = vpop.permute.xlu0 %477
        %479 = vrot.lane.b32.xlu0 %v310, 110
        %v480 = vpop.permute.xlu0 %479
        %481 = vrot.lane.b32.xlu0 %v311, 110
        %v482 = vpop.permute.xlu0 %481
        %483 = vrot.lane.b32.xlu0 %v312, 110
        %v484 = vpop.permute.xlu0 %483
        %485 = vrot.lane.b32.xlu0 %v313, 110
        %v486 = vpop.permute.xlu0 %485
        %487 = vrot.lane.b32.xlu0 %v314, 110
        %v488 = vpop.permute.xlu0 %487
        %489 = vrot.lane.b32.xlu0 %v315, 110
        %v490 = vpop.permute.xlu0 %489
        %491 = vrot.lane.b32.xlu0 %v316, 110
        %v492 = vpop.permute.xlu0 %491
        %493 = vrot.lane.b32.xlu0 %v317, 110
        %v494 = vpop.permute.xlu0 %493
        %495 = vrot.lane.b32.xlu0 %v318, 110
        %v496 = vpop.permute.xlu0 %495
        %497 = vrot.lane.b32.xlu0 %v319, 110
        %v498 = vpop.permute.xlu0 %497
        %499 = vrot.lane.b32.xlu0 %v357, 110
        %v500 = vpop.permute.xlu0 %499
        %501 = vrot.lane.b32.xlu0 %v358, 110
        %v502 = vpop.permute.xlu0 %501
        %503 = vrot.lane.b32.xlu0 %v337, 110
        %v504 = vpop.permute.xlu0 %503
        %505 = vrot.lane.b32.xlu0 %v359, 110
        %v506 = vpop.permute.xlu0 %505
        %507 = vrot.lane.b32.xlu0 %v360, 110
        %v508 = vpop.permute.xlu0 %507
        %509 = vrot.lane.b32.xlu0 %v343, 110
        %v510 = vpop.permute.xlu0 %509
        %511 = vrot.lane.b32.xlu0 %v361, 110
        %v512 = vpop.permute.xlu0 %511
        %513 = vrot.lane.b32.xlu0 %v362, 110
        %v514 = vpop.permute.xlu0 %513
        %515 = vrot.lane.b32.xlu0 %v349, 110
        %v516 = vpop.permute.xlu0 %515
        %517 = vrot.lane.b32.xlu0 %v363, 110
        %v518 = vpop.permute.xlu0 %517
        %519 = vrot.lane.b32.xlu0 %v364, 110
        %v520 = vpop.permute.xlu0 %519
        %521 = vrot.lane.b32.xlu0 %v355, 110
        %v522 = vpop.permute.xlu0 %521
        %523 = vrot.lane.b32.xlu0 %v402, 110
        %v524 = vpop.permute.xlu0 %523
        %525 = vrot.lane.b32.xlu0 %v403, 110
        %v526 = vpop.permute.xlu0 %525
        %527 = vrot.lane.b32.xlu0 %v382, 110
        %v528 = vpop.permute.xlu0 %527
        %529 = vrot.lane.b32.xlu0 %v404, 110
        %v530 = vpop.permute.xlu0 %529
        %531 = vrot.lane.b32.xlu0 %v405, 110
        %v532 = vpop.permute.xlu0 %531
        %533 = vrot.lane.b32.xlu0 %v388, 110
        %v534 = vpop.permute.xlu0 %533
        %535 = vrot.lane.b32.xlu0 %v406, 110
        %v536 = vpop.permute.xlu0 %535
        %537 = vrot.lane.b32.xlu0 %v407, 110
        %v538 = vpop.permute.xlu0 %537
        %539 = vrot.lane.b32.xlu0 %v394, 110
        %v540 = vpop.permute.xlu0 %539
        %541 = vrot.lane.b32.xlu0 %v408, 110
        %v542 = vpop.permute.xlu0 %541
        %543 = vrot.lane.b32.xlu0 %v409, 110
        %v544 = vpop.permute.xlu0 %543
        %545 = vrot.lane.b32.xlu0 %v400, 110
        %v546 = vpop.permute.xlu0 %545
        %vm547 = vcmask 900096
        %v548 = vsel %vm547, %v476, %v478
        %v549 = vsel %vm547, %v478, %v480
        %v550 = vsel %vm547, %v482, %v484
        %v551 = vsel %vm547, %v484, %v486
        %v552 = vsel %vm547, %v488, %v490
        %v553 = vsel %vm547, %v490, %v492
        %v554 = vsel %vm547, %v494, %v496
        %v555 = vsel %vm547, %v496, %v498
        %v556 = vsel %vm547, %v500, %v502
        %v557 = vsel %vm547, %v502, %v504
        %v558 = vsel %vm547, %v506, %v508
        %v559 = vsel %vm547, %v508, %v510
        %v560 = vsel %vm547, %v512, %v514
        %v561 = vsel %vm547, %v514, %v516
        %v562 = vsel %vm547, %v518, %v520
        %v563 = vsel %vm547, %v520, %v522
        %v564 = vsel %vm547, %v524, %v526
        %v565 = vsel %vm547, %v526, %v528
        %v566 = vsel %vm547, %v530, %v532
        %v567 = vsel %vm547, %v532, %v534
        %v568 = vsel %vm547, %v536, %v538
        %v569 = vsel %vm547, %v538, %v540
        %v570 = vsel %vm547, %v542, %v544
        %v571 = vsel %vm547, %v544, %v546
        %vm608 = vcmask 523264
        %v610 = vsel %vm608, %v464, 0
        %v613 = vsel %vm608, %v466, 0
        %v616 = vsel %vm608, %v468, 0
        %v619 = vsel %vm608, %v470, 0
        %621 = vmatprep.subr.bf16.mxu0 %v549
        %622 = vmatpush1.bf16.msra.mxu0 %v548
        %623 = vmatprep.subr.bf16.mxu0 %v551
        %624 = vmatpush1.bf16.msra.mxu0 %v550
        %625 = vmatprep.subr.bf16.mxu0 %v553
        %626 = vmatpush1.bf16.msra.mxu0 %v552
        %627 = vmatprep.subr.bf16.mxu0 %v555
        %628 = vmatpush1.bf16.msra.mxu0 %v554
        %629 = vmatprep.subr.bf16.mxu0 %v557
        %630 = vmatpush1.bf16.msra.mxu0 %v556
        %631 = vmatprep.subr.bf16.mxu0 %v559
        %632 = vmatpush1.bf16.msra.mxu0 %v558
        %633 = vmatprep.subr.bf16.mxu0 %v561
        %634 = vmatpush1.bf16.msra.mxu0 %v560
        %635 = vmatprep.subr.bf16.mxu0 %v563
        %636 = vmatpush1.bf16.msra.mxu0 %v562
        %637 = vmatprep.subr.bf16.mxu0 %v565
        %638 = vmatpush1.bf16.msra.mxu0 %v564
        %639 = vmatprep.subr.bf16.mxu0 %v567
        %640 = vmatpush1.bf16.msra.mxu0 %v566
        %641 = vmatprep.subr.bf16.mxu0 %v569
        %642 = vmatpush1.bf16.msra.mxu0 %v568
        %643 = vmatprep.subr.bf16.mxu0 %v571
        %644 = vmatpush1.bf16.msra.mxu0 %v570
        %645 = vmatprep.subr.bf16.mxu0 0
        %646 = vmatpush1.bf16.msra.mxu0 0
        %647 = vmatprep.subr.bf16.mxu0 0
        %648 = vmatpush1.bf16.msra.mxu0 0
        %649 = vmatprep.subr.bf16.mxu0 0
        %650 = vmatpush1.bf16.msra.mxu0 0
        %651 = vmatprep.subr.bf16.mxu0 0
        %652 = vmatpush1.bf16.msra.mxu0 0
        %653 = vmatprep.mubr.bf16.mxu0 %v610
        %654 = vmatmul.mubr.bf16.gmra.mrb[0].mxu0 %v463
        %v655 = vpop.f32.mrb[0].mxu0
        %v656 = vadd.f32 0.0, %v655
        %v657 = vpop.f32.mrb[0].mxu0
        %v658 = vadd.f32 0.0, %v657
        %v659 = vpop.f32.mrb[0].mxu0
        %v660 = vadd.f32 0.0, %v659
        %v661 = vpop.f32.mrb[0].mxu0
        %v662 = vadd.f32 0.0, %v661
        %663 = vmatprep.mubr.bf16.mxu0 %v613
        %664 = vmatmul.mubr.bf16.gmra.mrb[0].mxu0 %v465
        %v665 = vpop.f32.mrb[0].mxu0
        %v666 = vadd.f32 0.0, %v665
        %v667 = vpop.f32.mrb[0].mxu0
        %v668 = vadd.f32 0.0, %v667
        %v669 = vpop.f32.mrb[0].mxu0
        %v670 = vadd.f32 0.0, %v669
        %v671 = vpop.f32.mrb[0].mxu0
        %v672 = vadd.f32 0.0, %v671
        %673 = vmatprep.mubr.bf16.mxu0 %v616
        %674 = vmatmul.mubr.bf16.gmra.mrb[0].mxu0 %v467
        %v675 = vpop.f32.mrb[0].mxu0
        %v676 = vadd.f32 0.0, %v675
        %v677 = vpop.f32.mrb[0].mxu0
        %v678 = vadd.f32 0.0, %v677
        %v679 = vpop.f32.mrb[0].mxu0
        %v680 = vadd.f32 0.0, %v679
        %v681 = vpop.f32.mrb[0].mxu0
        %v682 = vadd.f32 0.0, %v681
        %683 = vmatprep.mubr.bf16.mxu0 %v619
        %684 = vmatmul.mubr.bf16.gmra.mrb[0].mxu0 %v469
        %v685 = vpop.f32.mrb[0].mxu0
        %v686 = vadd.f32 0.0, %v685
        %v687 = vpop.f32.mrb[0].mxu0
        %v688 = vadd.f32 0.0, %v687
        %v689 = vpop.f32.mrb[0].mxu0
        %v690 = vadd.f32 0.0, %v689
        %v691 = vpop.f32.mrb[0].mxu0
        %v692 = vadd.f32 0.0, %v691
        %693 = vdwg.mxu0
        %694 = vmatprep.subr.bf16.mxu0 0
        %695 = vmatpush1.bf16.msra.mxu0 %v480
        %696 = vmatprep.subr.bf16.mxu0 0
        %697 = vmatpush1.bf16.msra.mxu0 %v486
        %698 = vmatprep.subr.bf16.mxu0 0
        %699 = vmatpush1.bf16.msra.mxu0 %v492
        %700 = vmatprep.subr.bf16.mxu0 0
        %701 = vmatpush1.bf16.msra.mxu0 %v498
        %702 = vmatprep.subr.bf16.mxu0 0
        %703 = vmatpush1.bf16.msra.mxu0 %v504
        %704 = vmatprep.subr.bf16.mxu0 0
        %705 = vmatpush1.bf16.msra.mxu0 %v510
        %706 = vmatprep.subr.bf16.mxu0 0
        %707 = vmatpush1.bf16.msra.mxu0 %v516
        %708 = vmatprep.subr.bf16.mxu0 0
        %709 = vmatpush1.bf16.msra.mxu0 %v522
        %710 = vmatprep.subr.bf16.mxu0 0
        %711 = vmatpush1.bf16.msra.mxu0 %v528
        %712 = vmatprep.subr.bf16.mxu0 0
        %713 = vmatpush1.bf16.msra.mxu0 %v534
        %714 = vmatprep.subr.bf16.mxu0 0
        %715 = vmatpush1.bf16.msra.mxu0 %v540
        %716 = vmatprep.subr.bf16.mxu0 0
        %717 = vmatpush1.bf16.msra.mxu0 %v546
        %718 = vmatprep.subr.bf16.mxu0 0
        %719 = vmatpush1.bf16.msra.mxu0 0
        %720 = vmatprep.subr.bf16.mxu0 0
        %721 = vmatpush1.bf16.msra.mxu0 0
        %722 = vmatprep.subr.bf16.mxu0 0
        %723 = vmatpush1.bf16.msra.mxu0 0
        %724 = vmatprep.subr.bf16.mxu0 0
        %725 = vmatpush1.bf16.msra.mxu0 0
        %726 = vmatprep.mubr.bf16.mxu0 %v610
        %727 = vmatmul.mubr.bf16.gmra.mrb[0].mxu0 %v463
        %v728 = vpop.f32.mrb[0].mxu0
        %v729 = vadd.f32 0.0, %v728
        %v730 = vpop.f32.mrb[0].mxu0
        %v731 = vpop.f32.mrb[0].mxu0
        %v732 = vadd.f32 0.0, %v731
        %v733 = vpop.f32.mrb[0].mxu0
        %734 = vmatprep.mubr.bf16.mxu0 %v613
        %735 = vmatmul.mubr.bf16.gmra.mrb[0].mxu0 %v465
        %v736 = vpop.f32.mrb[0].mxu0
        %v737 = vadd.f32 0.0, %v736
        %v738 = vpop.f32.mrb[0].mxu0
        %v739 = vpop.f32.mrb[0].mxu0
        %v740 = vadd.f32 0.0, %v739
        %v741 = vpop.f32.mrb[0].mxu0
        %742 = vmatprep.mubr.bf16.mxu0 %v616
        %743 = vmatmul.mubr.bf16.gmra.mrb[0].mxu0 %v467
        %v744 = vpop.f32.mrb[0].mxu0
        %v745 = vadd.f32 0.0, %v744
        %v746 = vpop.f32.mrb[0].mxu0
        %v747 = vpop.f32.mrb[0].mxu0
        %v748 = vadd.f32 0.0, %v747
        %v749 = vpop.f32.mrb[0].mxu0
        %750 = vmatprep.mubr.bf16.mxu0 %v619
        %751 = vmatmul.mubr.bf16.gmra.mrb[0].mxu0 %v469
        %v752 = vpop.f32.mrb[0].mxu0
        %v753 = vadd.f32 0.0, %v752
        %v754 = vpop.f32.mrb[0].mxu0
        %v755 = vpop.f32.mrb[0].mxu0
        %v756 = vadd.f32 0.0, %v755
        %v757 = vpop.f32.mrb[0].mxu0
        %758 = vdwg.mxu0
        %v767 = vunpack.c.l.b16 %v422
        %v768 = vunpack.c.h.b16 %v422
        %v769 = vunpack.c.l.b16 %v423
        %v770 = vunpack.c.h.b16 %v423
        %v771 = vunpack.c.l.b16 %v424
        %v772 = vunpack.c.h.b16 %v424
        %v773 = vunpack.c.l.b16 %v425
        %v774 = vunpack.c.h.b16 %v425
        %v775 = vunpack.c.l.b16 %v426
        %v776 = vunpack.c.h.b16 %v426
        %v777 = vunpack.c.l.b16 %v427
        %v778 = vunpack.c.h.b16 %v427
        %v779 = vunpack.c.l.b16 %v428
        %v780 = vunpack.c.h.b16 %v428
        %v781 = vunpack.c.l.b16 %v429
        %v782 = vunpack.c.h.b16 %v429
        %v783 = vpack.c.b16 %v769, %v767
        %v784 = vpack.c.b16 %v770, %v768
        %v785 = vpack.c.b16 %v773, %v771
        %v786 = vpack.c.b16 %v774, %v772
        %v787 = vpack.c.b16 %v777, %v775
        %v788 = vpack.c.b16 %v778, %v776
        %v789 = vpack.c.b16 %v781, %v779
        %v790 = vpack.c.b16 %v782, %v780
        %v796 = vsel %vm608, %v784, 0
        %v799 = vsel %vm608, %v786, 0
        %v802 = vsel %vm608, %v788, 0
        %v805 = vsel %vm608, %v790, 0
        %807 = vmatprep.subr.bf16.mxu0 %v309
        %808 = vmatpush1.bf16.msra.mxu0 %v308
        %809 = vmatprep.subr.bf16.mxu0 %v312
        %810 = vmatpush1.bf16.msra.mxu0 %v311
        %811 = vmatprep.subr.bf16.mxu0 %v315
        %812 = vmatpush1.bf16.msra.mxu0 %v314
        %813 = vmatprep.subr.bf16.mxu0 %v318
        %814 = vmatpush1.bf16.msra.mxu0 %v317
        %815 = vmatprep.subr.bf16.mxu0 %v358
        %816 = vmatpush1.bf16.msra.mxu0 %v357
        %817 = vmatprep.subr.bf16.mxu0 %v360
        %818 = vmatpush1.bf16.msra.mxu0 %v359
        %819 = vmatprep.subr.bf16.mxu0 %v362
        %820 = vmatpush1.bf16.msra.mxu0 %v361
        %821 = vmatprep.subr.bf16.mxu0 %v364
        %822 = vmatpush1.bf16.msra.mxu0 %v363
        %823 = vmatprep.subr.bf16.mxu0 %v403
        %824 = vmatpush1.bf16.msra.mxu0 %v402
        %825 = vmatprep.subr.bf16.mxu0 %v405
        %826 = vmatpush1.bf16.msra.mxu0 %v404
        %827 = vmatprep.subr.bf16.mxu0 %v407
        %828 = vmatpush1.bf16.msra.mxu0 %v406
        %829 = vmatprep.subr.bf16.mxu0 %v409
        %830 = vmatpush1.bf16.msra.mxu0 %v408
        %831 = vmatprep.subr.bf16.mxu0 0
        %832 = vmatpush1.bf16.msra.mxu0 0
        %833 = vmatprep.subr.bf16.mxu0 0
        %834 = vmatpush1.bf16.msra.mxu0 0
        %835 = vmatprep.subr.bf16.mxu0 0
        %836 = vmatpush1.bf16.msra.mxu0 0
        %837 = vmatprep.subr.bf16.mxu0 0
        %838 = vmatpush1.bf16.msra.mxu0 0
        %839 = vmatprep.mubr.bf16.mxu0 %v796
        %840 = vmatmul.mubr.bf16.gmra.mrb[0].mxu0 %v783
        %v841 = vpop.f32.mrb[0].mxu0
        %v842 = vadd.f32 %v656, %v841
        %v843 = vpop.f32.mrb[0].mxu0
        %v844 = vadd.f32 %v658, %v843
        %v845 = vpop.f32.mrb[0].mxu0
        %v846 = vadd.f32 %v660, %v845
        %v847 = vpop.f32.mrb[0].mxu0
        %v848 = vadd.f32 %v662, %v847
        %849 = vmatprep.mubr.bf16.mxu0 %v799
        %850 = vmatmul.mubr.bf16.gmra.mrb[0].mxu0 %v785
        %v851 = vpop.f32.mrb[0].mxu0
        %v852 = vadd.f32 %v666, %v851
        %v853 = vpop.f32.mrb[0].mxu0
        %v854 = vadd.f32 %v668, %v853
        %v855 = vpop.f32.mrb[0].mxu0
        %v856 = vadd.f32 %v670, %v855
        %v857 = vpop.f32.mrb[0].mxu0
        %v858 = vadd.f32 %v672, %v857
        %859 = vmatprep.mubr.bf16.mxu0 %v802
        %860 = vmatmul.mubr.bf16.gmra.mrb[0].mxu0 %v787
        %v861 = vpop.f32.mrb[0].mxu0
        %v862 = vadd.f32 %v676, %v861
        %v863 = vpop.f32.mrb[0].mxu0
        %v864 = vadd.f32 %v678, %v863
        %v865 = vpop.f32.mrb[0].mxu0
        %v866 = vadd.f32 %v680, %v865
        %v867 = vpop.f32.mrb[0].mxu0
        %v868 = vadd.f32 %v682, %v867
        %869 = vmatprep.mubr.bf16.mxu0 %v805
        %870 = vmatmul.mubr.bf16.gmra.mrb[0].mxu0 %v789
        %v871 = vpop.f32.mrb[0].mxu0
        %v872 = vadd.f32 %v686, %v871
        %v873 = vpop.f32.mrb[0].mxu0
        %v874 = vadd.f32 %v688, %v873
        %v875 = vpop.f32.mrb[0].mxu0
        %v876 = vadd.f32 %v690, %v875
        %v877 = vpop.f32.mrb[0].mxu0
        %v878 = vadd.f32 %v692, %v877
        %879 = vdwg.mxu0
        %880 = vmatprep.subr.bf16.mxu0 0
        %881 = vmatpush1.bf16.msra.mxu0 %v310
        %882 = vmatprep.subr.bf16.mxu0 0
        %883 = vmatpush1.bf16.msra.mxu0 %v313
        %884 = vmatprep.subr.bf16.mxu0 0
        %885 = vmatpush1.bf16.msra.mxu0 %v316
        %886 = vmatprep.subr.bf16.mxu0 0
        %887 = vmatpush1.bf16.msra.mxu0 %v319
        %888 = vmatprep.subr.bf16.mxu0 0
        %889 = vmatpush1.bf16.msra.mxu0 %v337
        %890 = vmatprep.subr.bf16.mxu0 0
        %891 = vmatpush1.bf16.msra.mxu0 %v343
        %892 = vmatprep.subr.bf16.mxu0 0
        %893 = vmatpush1.bf16.msra.mxu0 %v349
        %894 = vmatprep.subr.bf16.mxu0 0
        %895 = vmatpush1.bf16.msra.mxu0 %v355
        %896 = vmatprep.subr.bf16.mxu0 0
        %897 = vmatpush1.bf16.msra.mxu0 %v382
        %898 = vmatprep.subr.bf16.mxu0 0
        %899 = vmatpush1.bf16.msra.mxu0 %v388
        %900 = vmatprep.subr.bf16.mxu0 0
        %901 = vmatpush1.bf16.msra.mxu0 %v394
        %902 = vmatprep.subr.bf16.mxu0 0
        %903 = vmatpush1.bf16.msra.mxu0 %v400
        %904 = vmatprep.subr.bf16.mxu0 0
        %905 = vmatpush1.bf16.msra.mxu0 0
        %906 = vmatprep.subr.bf16.mxu0 0
        %907 = vmatpush1.bf16.msra.mxu0 0
        %908 = vmatprep.subr.bf16.mxu0 0
        %909 = vmatpush1.bf16.msra.mxu0 0
        %910 = vmatprep.subr.bf16.mxu0 0
        %911 = vmatpush1.bf16.msra.mxu0 0
        %912 = vmatprep.mubr.bf16.mxu0 %v796
        %913 = vmatmul.mubr.bf16.gmra.mrb[0].mxu0 %v783
        %v914 = vpop.f32.mrb[0].mxu0
        %v915 = vadd.f32 %v729, %v914
        %v916 = vpop.f32.mrb[0].mxu0
        %v917 = vpop.f32.mrb[0].mxu0
        %v918 = vadd.f32 %v732, %v917
        %v919 = vpop.f32.mrb[0].mxu0
        %920 = vmatprep.mubr.bf16.mxu0 %v799
        %921 = vmatmul.mubr.bf16.gmra.mrb[0].mxu0 %v785
        %v922 = vpop.f32.mrb[0].mxu0
        %v923 = vadd.f32 %v737, %v922
        %v924 = vpop.f32.mrb[0].mxu0
        %v925 = vpop.f32.mrb[0].mxu0
        %v926 = vadd.f32 %v740, %v925
        %v927 = vpop.f32.mrb[0].mxu0
        %928 = vmatprep.mubr.bf16.mxu0 %v802
        %929 = vmatmul.mubr.bf16.gmra.mrb[0].mxu0 %v787
        %v930 = vpop.f32.mrb[0].mxu0
        %v931 = vadd.f32 %v745, %v930
        %v932 = vpop.f32.mrb[0].mxu0
        %v933 = vpop.f32.mrb[0].mxu0
        %v934 = vadd.f32 %v748, %v933
        %v935 = vpop.f32.mrb[0].mxu0
        %936 = vmatprep.mubr.bf16.mxu0 %v805
        %937 = vmatmul.mubr.bf16.gmra.mrb[0].mxu0 %v789
        %v938 = vpop.f32.mrb[0].mxu0
        %v939 = vadd.f32 %v753, %v938
        %v940 = vpop.f32.mrb[0].mxu0
        %v941 = vpop.f32.mrb[0].mxu0
        %v942 = vadd.f32 %v756, %v941
        %v943 = vpop.f32.mrb[0].mxu0
        %944 = vdwg.mxu0
        %s945 = scalar_lea.vmem [#allocation7], 128
        %v946 = vld [vmem:[%s945] sm:$0xff]
        %v947 = vld [vmem:[%s945 + $0x8] sm:$0xff]
        %v948 = vld [vmem:[%s945 + $0x10] sm:$0xff]
        %v949 = vld [vmem:[%s945 + $0x18] sm:$0xff]
        %v950 = vld [vmem:[%s945 + $0x20] sm:$0xff]
        %v951 = vld [vmem:[%s945 + $0x28] sm:$0xff]
        %v952 = vld [vmem:[%s945 + $0x30] sm:$0xff]
        %v953 = vld [vmem:[%s945 + $0x38] sm:$0xff]
        %v962 = vunpack.c.l.b16 %v946
        %v963 = vunpack.c.h.b16 %v946
        %v964 = vunpack.c.l.b16 %v947
        %v965 = vunpack.c.h.b16 %v947
        %v966 = vunpack.c.l.b16 %v948
        %v967 = vunpack.c.h.b16 %v948
        %v968 = vunpack.c.l.b16 %v949
        %v969 = vunpack.c.h.b16 %v949
        %v970 = vunpack.c.l.b16 %v950
        %v971 = vunpack.c.h.b16 %v950
        %v972 = vunpack.c.l.b16 %v951
        %v973 = vunpack.c.h.b16 %v951
        %v974 = vunpack.c.l.b16 %v952
        %v975 = vunpack.c.h.b16 %v952
        %v976 = vunpack.c.l.b16 %v953
        %v977 = vunpack.c.h.b16 %v953
        %v978 = vpack.c.b16 %v964, %v962
        %v979 = vpack.c.b16 %v965, %v963
        %v980 = vpack.c.b16 %v968, %v966
        %v981 = vpack.c.b16 %v969, %v967
        %v982 = vpack.c.b16 %v972, %v970
        %v983 = vpack.c.b16 %v973, %v971
        %v984 = vpack.c.b16 %v976, %v974
        %v985 = vpack.c.b16 %v977, %v975
        %990 = vrot.lane.b32.xlu0 %v308, 92
        %v991 = vpop.permute.xlu0 %990
        %992 = vrot.lane.b32.xlu0 %v309, 92
        %v993 = vpop.permute.xlu0 %992
        %994 = vrot.lane.b32.xlu0 %v310, 92
        %v995 = vpop.permute.xlu0 %994
        %996 = vrot.lane.b32.xlu0 %v311, 92
        %v997 = vpop.permute.xlu0 %996
        %998 = vrot.lane.b32.xlu0 %v312, 92
        %v999 = vpop.permute.xlu0 %998
        %1000 = vrot.lane.b32.xlu0 %v313, 92
        %v1001 = vpop.permute.xlu0 %1000
        %1002 = vrot.lane.b32.xlu0 %v314, 92
        %v1003 = vpop.permute.xlu0 %1002
        %1004 = vrot.lane.b32.xlu0 %v315, 92
        %v1005 = vpop.permute.xlu0 %1004
        %1006 = vrot.lane.b32.xlu0 %v316, 92
        %v1007 = vpop.permute.xlu0 %1006
        %1008 = vrot.lane.b32.xlu0 %v317, 92
        %v1009 = vpop.permute.xlu0 %1008
        %1010 = vrot.lane.b32.xlu0 %v318, 92
        %v1011 = vpop.permute.xlu0 %1010
        %1012 = vrot.lane.b32.xlu0 %v319, 92
        %v1013 = vpop.permute.xlu0 %1012
        %1014 = vrot.lane.b32.xlu0 %v357, 92
        %v1015 = vpop.permute.xlu0 %1014
        %1016 = vrot.lane.b32.xlu0 %v358, 92
        %v1017 = vpop.permute.xlu0 %1016
        %1018 = vrot.lane.b32.xlu0 %v337, 92
        %v1019 = vpop.permute.xlu0 %1018
        %1020 = vrot.lane.b32.xlu0 %v359, 92
        %v1021 = vpop.permute.xlu0 %1020
        %1022 = vrot.lane.b32.xlu0 %v360, 92
        %v1023 = vpop.permute.xlu0 %1022
        %1024 = vrot.lane.b32.xlu0 %v343, 92
        %v1025 = vpop.permute.xlu0 %1024
        %1026 = vrot.lane.b32.xlu0 %v361, 92
        %v1027 = vpop.permute.xlu0 %1026
        %1028 = vrot.lane.b32.xlu0 %v362, 92
        %v1029 = vpop.permute.xlu0 %1028
        %1030 = vrot.lane.b32.xlu0 %v349, 92
        %v1031 = vpop.permute.xlu0 %1030
        %1032 = vrot.lane.b32.xlu0 %v363, 92
        %v1033 = vpop.permute.xlu0 %1032
        %1034 = vrot.lane.b32.xlu0 %v364, 92
        %v1035 = vpop.permute.xlu0 %1034
        %1036 = vrot.lane.b32.xlu0 %v355, 92
        %v1037 = vpop.permute.xlu0 %1036
        %1038 = vrot.lane.b32.xlu0 %v402, 92
        %v1039 = vpop.permute.xlu0 %1038
        %1040 = vrot.lane.b32.xlu0 %v403, 92
        %v1041 = vpop.permute.xlu0 %1040
        %1042 = vrot.lane.b32.xlu0 %v382, 92
        %v1043 = vpop.permute.xlu0 %1042
        %1044 = vrot.lane.b32.xlu0 %v404, 92
        %v1045 = vpop.permute.xlu0 %1044
        %1046 = vrot.lane.b32.xlu0 %v405, 92
        %v1047 = vpop.permute.xlu0 %1046
        %1048 = vrot.lane.b32.xlu0 %v388, 92
        %v1049 = vpop.permute.xlu0 %1048
        %1050 = vrot.lane.b32.xlu0 %v406, 92
        %v1051 = vpop.permute.xlu0 %1050
        %1052 = vrot.lane.b32.xlu0 %v407, 92
        %v1053 = vpop.permute.xlu0 %1052
        %1054 = vrot.lane.b32.xlu0 %v394, 92
        %v1055 = vpop.permute.xlu0 %1054
        %1056 = vrot.lane.b32.xlu0 %v408, 92
        %v1057 = vpop.permute.xlu0 %1056
        %1058 = vrot.lane.b32.xlu0 %v409, 92
        %v1059 = vpop.permute.xlu0 %1058
        %1060 = vrot.lane.b32.xlu0 %v400, 92
        %v1061 = vpop.permute.xlu0 %1060
        %vm1062 = vcmask 752640
        %v1063 = vsel %vm1062, %v991, %v993
        %v1064 = vsel %vm1062, %v993, %v995
        %v1065 = vsel %vm1062, %v997, %v999
        %v1066 = vsel %vm1062, %v999, %v1001
        %v1067 = vsel %vm1062, %v1003, %v1005
        %v1068 = vsel %vm1062, %v1005, %v1007
        %v1069 = vsel %vm1062, %v1009, %v1011
        %v1070 = vsel %vm1062, %v1011, %v1013
        %v1071 = vsel %vm1062, %v1015, %v1017
        %v1072 = vsel %vm1062, %v1017, %v1019
        %v1073 = vsel %vm1062, %v1021, %v1023
        %v1074 = vsel %vm1062, %v1023, %v1025
        %v1075 = vsel %vm1062, %v1027, %v1029
        %v1076 = vsel %vm1062, %v1029, %v1031
        %v1077 = vsel %vm1062, %v1033, %v1035
        %v1078 = vsel %vm1062, %v1035, %v1037
        %v1079 = vsel %vm1062, %v1039, %v1041
        %v1080 = vsel %vm1062, %v1041, %v1043
        %v1081 = vsel %vm1062, %v1045, %v1047
        %v1082 = vsel %vm1062, %v1047, %v1049
        %v1083 = vsel %vm1062, %v1051, %v1053
        %v1084 = vsel %vm1062, %v1053, %v1055
        %v1085 = vsel %vm1062, %v1057, %v1059
        %v1086 = vsel %vm1062, %v1059, %v1061
        %v1124 = vsel %vm608, %v979, 0
        %v1127 = vsel %vm608, %v981, 0
        %v1130 = vsel %vm608, %v983, 0
        %v1133 = vsel %vm608, %v985, 0
        %1135 = vmatprep.subr.bf16.mxu0 %v1064
        %1136 = vmatpush1.bf16.msra.mxu0 %v1063
        %1137 = vmatprep.subr.bf16.mxu0 %v1066
        %1138 = vmatpush1.bf16.msra.mxu0 %v1065
        %1139 = vmatprep.subr.bf16.mxu0 %v1068
        %1140 = vmatpush1.bf16.msra.mxu0 %v1067
        %1141 = vmatprep.subr.bf16.mxu0 %v1070
        %1142 = vmatpush1.bf16.msra.mxu0 %v1069
        %1143 = vmatprep.subr.bf16.mxu0 %v1072
        %1144 = vmatpush1.bf16.msra.mxu0 %v1071
        %1145 = vmatprep.subr.bf16.mxu0 %v1074
        %1146 = vmatpush1.bf16.msra.mxu0 %v1073
        %1147 = vmatprep.subr.bf16.mxu0 %v1076
        %1148 = vmatpush1.bf16.msra.mxu0 %v1075
        %1149 = vmatprep.subr.bf16.mxu0 %v1078
        %1150 = vmatpush1.bf16.msra.mxu0 %v1077
        %1151 = vmatprep.subr.bf16.mxu0 %v1080
        %1152 = vmatpush1.bf16.msra.mxu0 %v1079
        %1153 = vmatprep.subr.bf16.mxu0 %v1082
        %1154 = vmatpush1.bf16.msra.mxu0 %v1081
        %1155 = vmatprep.subr.bf16.mxu0 %v1084
        %1156 = vmatpush1.bf16.msra.mxu0 %v1083
        %1157 = vmatprep.subr.bf16.mxu0 %v1086
        %1158 = vmatpush1.bf16.msra.mxu0 %v1085
        %1159 = vmatprep.subr.bf16.mxu0 0
        %1160 = vmatpush1.bf16.msra.mxu0 0
        %1161 = vmatprep.subr.bf16.mxu0 0
        %1162 = vmatpush1.bf16.msra.mxu0 0
        %1163 = vmatprep.subr.bf16.mxu0 0
        %1164 = vmatpush1.bf16.msra.mxu0 0
        %1165 = vmatprep.subr.bf16.mxu0 0
        %1166 = vmatpush1.bf16.msra.mxu0 0
        %1167 = vmatprep.mubr.bf16.mxu0 %v1124
        %1168 = vmatmul.mubr.bf16.gmra.mrb[0].mxu0 %v978
        %v1169 = vpop.f32.mrb[0].mxu0
        %v1170 = vadd.f32 0.0, %v1169
        %v1171 = vpop.f32.mrb[0].mxu0
        %v1172 = vadd.f32 0.0, %v1171
        %v1173 = vpop.f32.mrb[0].mxu0
        %v1174 = vadd.f32 0.0, %v1173
        %v1175 = vpop.f32.mrb[0].mxu0
        %v1176 = vadd.f32 0.0, %v1175
        %1177 = vmatprep.mubr.bf16.mxu0 %v1127
        %1178 = vmatmul.mubr.bf16.gmra.mrb[0].mxu0 %v980
        %v1179 = vpop.f32.mrb[0].mxu0
        %v1180 = vadd.f32 0.0, %v1179
        %v1181 = vpop.f32.mrb[0].mxu0
        %v1182 = vadd.f32 0.0, %v1181
        %v1183 = vpop.f32.mrb[0].mxu0
        %v1184 = vadd.f32 0.0, %v1183
        %v1185 = vpop.f32.mrb[0].mxu0
        %v1186 = vadd.f32 0.0, %v1185
        %1187 = vmatprep.mubr.bf16.mxu0 %v1130
        %1188 = vmatmul.mubr.bf16.gmra.mrb[0].mxu0 %v982
        %v1189 = vpop.f32.mrb[0].mxu0
        %v1190 = vadd.f32 0.0, %v1189
        %v1191 = vpop.f32.mrb[0].mxu0
        %v1192 = vadd.f32 0.0, %v1191
        %v1193 = vpop.f32.mrb[0].mxu0
        %v1194 = vadd.f32 0.0, %v1193
        %v1195 = vpop.f32.mrb[0].mxu0
        %v1196 = vadd.f32 0.0, %v1195
        %1197 = vmatprep.mubr.bf16.mxu0 %v1133
        %1198 = vmatmul.mubr.bf16.gmra.mrb[0].mxu0 %v984
        %v1199 = vpop.f32.mrb[0].mxu0
        %v1200 = vadd.f32 0.0, %v1199
        %v1201 = vpop.f32.mrb[0].mxu0
        %v1202 = vadd.f32 0.0, %v1201
        %v1203 = vpop.f32.mrb[0].mxu0
        %v1204 = vadd.f32 0.0, %v1203
        %v1205 = vpop.f32.mrb[0].mxu0
        %v1206 = vadd.f32 0.0, %v1205
        %1207 = vdwg.mxu0
        %1208 = vmatprep.subr.bf16.mxu0 0
        %1209 = vmatpush1.bf16.msra.mxu0 %v995
        %1210 = vmatprep.subr.bf16.mxu0 0
        %1211 = vmatpush1.bf16.msra.mxu0 %v1001
        %1212 = vmatprep.subr.bf16.mxu0 0
        %1213 = vmatpush1.bf16.msra.mxu0 %v1007
        %1214 = vmatprep.subr.bf16.mxu0 0
        %1215 = vmatpush1.bf16.msra.mxu0 %v1013
        %1216 = vmatprep.subr.bf16.mxu0 0
        %1217 = vmatpush1.bf16.msra.mxu0 %v1019
        %1218 = vmatprep.subr.bf16.mxu0 0
        %1219 = vmatpush1.bf16.msra.mxu0 %v1025
        %1220 = vmatprep.subr.bf16.mxu0 0
        %1221 = vmatpush1.bf16.msra.mxu0 %v1031
        %1222 = vmatprep.subr.bf16.mxu0 0
        %1223 = vmatpush1.bf16.msra.mxu0 %v1037
        %1224 = vmatprep.subr.bf16.mxu0 0
        %1225 = vmatpush1.bf16.msra.mxu0 %v1043
        %1226 = vmatprep.subr.bf16.mxu0 0
        %1227 = vmatpush1.bf16.msra.mxu0 %v1049
        %1228 = vmatprep.subr.bf16.mxu0 0
        %1229 = vmatpush1.bf16.msra.mxu0 %v1055
        %1230 = vmatprep.subr.bf16.mxu0 0
        %1231 = vmatpush1.bf16.msra.mxu0 %v1061
        %1232 = vmatprep.subr.bf16.mxu0 0
        %1233 = vmatpush1.bf16.msra.mxu0 0
        %1234 = vmatprep.subr.bf16.mxu0 0
        %1235 = vmatpush1.bf16.msra.mxu0 0
        %1236 = vmatprep.subr.bf16.mxu0 0
        %1237 = vmatpush1.bf16.msra.mxu0 0
        %1238 = vmatprep.subr.bf16.mxu0 0
        %1239 = vmatpush1.bf16.msra.mxu0 0
        %1240 = vmatprep.mubr.bf16.mxu0 %v1124
        %1241 = vmatmul.mubr.bf16.gmra.mrb[0].mxu0 %v978
        %v1242 = vpop.f32.mrb[0].mxu0
        %v1243 = vadd.f32 0.0, %v1242
        %v1244 = vpop.f32.mrb[0].mxu0
        %v1245 = vpop.f32.mrb[0].mxu0
        %v1246 = vadd.f32 0.0, %v1245
        %v1247 = vpop.f32.mrb[0].mxu0
        %1248 = vmatprep.mubr.bf16.mxu0 %v1127
        %1249 = vmatmul.mubr.bf16.gmra.mrb[0].mxu0 %v980
        %v1250 = vpop.f32.mrb[0].mxu0
        %v1251 = vadd.f32 0.0, %v1250
        %v1252 = vpop.f32.mrb[0].mxu0
        %v1253 = vpop.f32.mrb[0].mxu0
        %v1254 = vadd.f32 0.0, %v1253
        %v1255 = vpop.f32.mrb[0].mxu0
        %1256 = vmatprep.mubr.bf16.mxu0 %v1130
        %1257 = vmatmul.mubr.bf16.gmra.mrb[0].mxu0 %v982
        %v1258 = vpop.f32.mrb[0].mxu0
        %v1259 = vadd.f32 0.0, %v1258
        %v1260 = vpop.f32.mrb[0].mxu0
        %v1261 = vpop.f32.mrb[0].mxu0
        %v1262 = vadd.f32 0.0, %v1261
        %v1263 = vpop.f32.mrb[0].mxu0
        %1264 = vmatprep.mubr.bf16.mxu0 %v1133
        %1265 = vmatmul.mubr.bf16.gmra.mrb[0].mxu0 %v984
        %v1266 = vpop.f32.mrb[0].mxu0
        %v1267 = vadd.f32 0.0, %v1266
        %v1268 = vpop.f32.mrb[0].mxu0
        %v1269 = vpop.f32.mrb[0].mxu0
        %v1270 = vadd.f32 0.0, %v1269
        %v1271 = vpop.f32.mrb[0].mxu0
        %1272 = vdwg.mxu0
        %v1273 = vadd.f32 %v842, %v1170
        %v1274 = vadd.f32 %v844, %v1172
        %v1275 = vadd.f32 %v915, %v1243
        %v1276 = vadd.f32 %v846, %v1174
        %v1277 = vadd.f32 %v848, %v1176
        %v1278 = vadd.f32 %v918, %v1246
        %v1279 = vadd.f32 %v852, %v1180
        %v1280 = vadd.f32 %v854, %v1182
        %v1281 = vadd.f32 %v923, %v1251
        %v1282 = vadd.f32 %v856, %v1184
        %v1283 = vadd.f32 %v858, %v1186
        %v1284 = vadd.f32 %v926, %v1254
        %v1285 = vadd.f32 %v862, %v1190
        %v1286 = vadd.f32 %v864, %v1192
        %v1287 = vadd.f32 %v931, %v1259
        %v1288 = vadd.f32 %v866, %v1194
        %v1289 = vadd.f32 %v868, %v1196
        %v1290 = vadd.f32 %v934, %v1262
        %v1291 = vadd.f32 %v872, %v1200
        %v1292 = vadd.f32 %v874, %v1202
        %v1293 = vadd.f32 %v939, %v1267
        %v1294 = vadd.f32 %v876, %v1204
        %v1295 = vadd.f32 %v878, %v1206
        %v1296 = vadd.f32 %v942, %v1270
        %v1297 = vmax.f32 %v1273, 0.0
        %v1298 = vmax.f32 %v1274, 0.0
        %v1299 = vmax.f32 %v1275, 0.0
        %v1300 = vmax.f32 %v1276, 0.0
        %v1301 = vmax.f32 %v1277, 0.0
        %v1302 = vmax.f32 %v1278, 0.0
        %v1303 = vmax.f32 %v1279, 0.0
        %v1304 = vmax.f32 %v1280, 0.0
        %v1305 = vmax.f32 %v1281, 0.0
        %v1306 = vmax.f32 %v1282, 0.0
        %v1307 = vmax.f32 %v1283, 0.0
        %v1308 = vmax.f32 %v1284, 0.0
        %v1309 = vmax.f32 %v1285, 0.0
        %v1310 = vmax.f32 %v1286, 0.0
        %v1311 = vmax.f32 %v1287, 0.0
        %v1312 = vmax.f32 %v1288, 0.0
        %v1313 = vmax.f32 %v1289, 0.0
        %v1314 = vmax.f32 %v1290, 0.0
        %v1315 = vmax.f32 %v1291, 0.0
        %v1316 = vmax.f32 %v1292, 0.0
        %v1317 = vmax.f32 %v1293, 0.0
        %v1318 = vmax.f32 %v1294, 0.0
        %v1319 = vmax.f32 %v1295, 0.0
        %v1320 = vmax.f32 %v1296, 0.0
        %vm1321 = vcmask 154624
        %1322 = vst.msk [vmem:[#allocation3] sm:$0xff] %vm1321, 0
        %1323 = vst.msk [vmem:[#allocation3 + $0x18] sm:$0xff] %vm1321, 0
        %1324 = vst.msk [vmem:[#allocation3 + $0x30] sm:$0xff] %vm1321, 0
        %1325 = vst.msk [vmem:[#allocation3 + $0x48] sm:$0xff] %vm1321, 0
        %vm1326 = vcmask 703896
        %1327 = vst.msk [vmem:[#allocation3 + $0x10] sm:$0xff] %vm1326, 0
        %1328 = vst.msk [vmem:[#allocation3 + $0x28] sm:$0xff] %vm1326, 0
        %1329 = vst.msk [vmem:[#allocation3 + $0x40] sm:$0xff] %vm1326, 0
        %1330 = vst.msk [vmem:[#allocation3 + $0x58] sm:$0xff] %vm1326, 0
        %v1331 = vld [vmem:[#allocation10] sm:$0x7]
        %v1333 = vlaneseq
        %v1334 = vshrl.u32 %v1333, 7
        %v1335 = vsub.s32 0, %v1334
        %v1336 = vrot.slane %v1331, %v1335
        %v1337 = vlaneseq
        %v1338 = vshrl.u32 %v1337, 7
        %v1339 = vsub.s32 1, %v1338
        %v1340 = vrot.slane %v1331, %v1339
        %v1341 = vlaneseq
        %v1342 = vshrl.u32 %v1341, 7
        %v1343 = vsub.s32 2, %v1342
        %v1344 = vrot.slane %v1331, %v1343
        %v1348 = vmul.f32 %v1297, %v1336
        %v1349 = vmul.f32 %v1298, %v1340
        %v1350 = vmul.f32 %v1299, %v1344
        %v1351 = vmul.f32 %v1300, %v1336
        %v1352 = vmul.f32 %v1301, %v1340
        %v1353 = vmul.f32 %v1302, %v1344
        %v1354 = vmul.f32 %v1303, %v1336
        %v1355 = vmul.f32 %v1304, %v1340
        %v1356 = vmul.f32 %v1305, %v1344
        %v1357 = vmul.f32 %v1306, %v1336
        %v1358 = vmul.f32 %v1307, %v1340
        %v1359 = vmul.f32 %v1308, %v1344
        %v1360 = vmul.f32 %v1309, %v1336
        %v1361 = vmul.f32 %v1310, %v1340
        %v1362 = vmul.f32 %v1311, %v1344
        %v1363 = vmul.f32 %v1312, %v1336
        %v1364 = vmul.f32 %v1313, %v1340
        %v1365 = vmul.f32 %v1314, %v1344
        %v1366 = vmul.f32 %v1315, %v1336
        %v1367 = vmul.f32 %v1316, %v1340
        %v1368 = vmul.f32 %v1317, %v1344
        %v1369 = vmul.f32 %v1318, %v1336
        %v1370 = vmul.f32 %v1319, %v1340
        %v1371 = vmul.f32 %v1320, %v1344
        %v1372 = vpack.c.bf16 %v1351, %v1348
        %v1373 = vpack.c.bf16 %v1352, %v1349
        %v1374 = vpack.c.bf16 %v1353, %v1350
        %v1375 = vpack.c.bf16 %v1357, %v1354
        %v1376 = vpack.c.bf16 %v1358, %v1355
        %v1377 = vpack.c.bf16 %v1359, %v1356
        %v1378 = vpack.c.bf16 %v1363, %v1360
        %v1379 = vpack.c.bf16 %v1364, %v1361
        %v1380 = vpack.c.bf16 %v1365, %v1362
        %v1381 = vpack.c.bf16 %v1369, %v1366
        %v1382 = vpack.c.bf16 %v1370, %v1367
        %v1383 = vpack.c.bf16 %v1371, %v1368
        %1396 = vrot.lane.b32.xlu0 %v1372, 19
        %v1397 = vpop.permute.xlu0 %1396
        %1398 = vrot.lane.b32.xlu0 %v1373, 19
        %v1399 = vpop.permute.xlu0 %1398
        %1400 = vrot.lane.b32.xlu0 %v1374, 19
        %v1401 = vpop.permute.xlu0 %1400
        %1402 = vrot.lane.b32.xlu0 %v1375, 19
        %v1403 = vpop.permute.xlu0 %1402
        %1404 = vrot.lane.b32.xlu0 %v1376, 19
        %v1405 = vpop.permute.xlu0 %1404
        %1406 = vrot.lane.b32.xlu0 %v1377, 19
        %v1407 = vpop.permute.xlu0 %1406
        %1408 = vrot.lane.b32.xlu0 %v1378, 19
        %v1409 = vpop.permute.xlu0 %1408
        %1410 = vrot.lane.b32.xlu0 %v1379, 19
        %v1411 = vpop.permute.xlu0 %1410
        %1412 = vrot.lane.b32.xlu0 %v1380, 19
        %v1413 = vpop.permute.xlu0 %1412
        %1414 = vrot.lane.b32.xlu0 %v1381, 19
        %v1415 = vpop.permute.xlu0 %1414
        %1416 = vrot.lane.b32.xlu0 %v1382, 19
        %v1417 = vpop.permute.xlu0 %1416
        %1418 = vrot.lane.b32.xlu0 %v1383, 19
        %v1419 = vpop.permute.xlu0 %1418
        %vm1420 = vcmask 154624
        %v1421 = vsel %vm1420, %v1397, %v1399
        %v1422 = vsel %vm1420, %v1399, %v1401
        %v1423 = vsel %vm1420, %v1403, %v1405
        %v1424 = vsel %vm1420, %v1405, %v1407
        %v1425 = vsel %vm1420, %v1409, %v1411
        %v1426 = vsel %vm1420, %v1411, %v1413
        %v1427 = vsel %vm1420, %v1415, %v1417
        %v1428 = vsel %vm1420, %v1417, %v1419
        %vm1441 = vcmask 1047704
        %1442 = vst.msk [vmem:[#allocation3] sm:$0xff] %vm1441, %v1397
        %1443 = vst [vmem:[#allocation3 + $0x8] sm:$0xff] %v1421
        %vm1444 = vcmask 416768
        %1445 = vst.msk [vmem:[#allocation3 + $0x10] sm:$0xff] %vm1444, %v1422
        %1446 = vst.msk [vmem:[#allocation3 + $0x18] sm:$0xff] %vm1441, %v1403
        %1447 = vst [vmem:[#allocation3 + $0x20] sm:$0xff] %v1423
        %1448 = vst.msk [vmem:[#allocation3 + $0x28] sm:$0xff] %vm1444, %v1424
        %1449 = vst.msk [vmem:[#allocation3 + $0x30] sm:$0xff] %vm1441, %v1409
        %1450 = vst [vmem:[#allocation3 + $0x38] sm:$0xff] %v1425
        %1451 = vst.msk [vmem:[#allocation3 + $0x40] sm:$0xff] %vm1444, %v1426
        %1452 = vst.msk [vmem:[#allocation3 + $0x48] sm:$0xff] %vm1441, %v1415
        %1453 = vst [vmem:[#allocation3 + $0x50] sm:$0xff] %v1427
        %1454 = vst.msk [vmem:[#allocation3 + $0x58] sm:$0xff] %vm1444, %v1428
        %v1455 = vld [vmem:[#allocation3] sm:$0xff]
        %v1456 = vld [vmem:[#allocation3 + $0x8] sm:$0xff]
        %v1457 = vld [vmem:[#allocation3 + $0x10] sm:$0xff]
        %v1458 = vld [vmem:[#allocation3 + $0x18] sm:$0xff]
        %v1459 = vld [vmem:[#allocation3 + $0x20] sm:$0xff]
        %v1460 = vld [vmem:[#allocation3 + $0x28] sm:$0xff]
        %v1461 = vld [vmem:[#allocation3 + $0x30] sm:$0xff]
        %v1462 = vld [vmem:[#allocation3 + $0x38] sm:$0xff]
        %v1463 = vld [vmem:[#allocation3 + $0x40] sm:$0xff]
        %v1464 = vld [vmem:[#allocation3 + $0x48] sm:$0xff]
        %v1465 = vld [vmem:[#allocation3 + $0x50] sm:$0xff]
        %v1466 = vld [vmem:[#allocation3 + $0x58] sm:$0xff]
        %1479 = vrot.lane.b32.xlu0 %v1455, 127
        %v1480 = vpop.permute.xlu0 %1479
        %1481 = vrot.lane.b32.xlu0 %v1456, 127
        %v1482 = vpop.permute.xlu0 %1481
        %1483 = vrot.lane.b32.xlu0 %v1457, 127
        %v1484 = vpop.permute.xlu0 %1483
        %1485 = vrot.lane.b32.xlu0 %v1458, 127
        %v1486 = vpop.permute.xlu0 %1485
        %1487 = vrot.lane.b32.xlu0 %v1459, 127
        %v1488 = vpop.permute.xlu0 %1487
        %1489 = vrot.lane.b32.xlu0 %v1460, 127
        %v1490 = vpop.permute.xlu0 %1489
        %1491 = vrot.lane.b32.xlu0 %v1461, 127
        %v1492 = vpop.permute.xlu0 %1491
        %1493 = vrot.lane.b32.xlu0 %v1462, 127
        %v1494 = vpop.permute.xlu0 %1493
        %1495 = vrot.lane.b32.xlu0 %v1463, 127
        %v1496 = vpop.permute.xlu0 %1495
        %1497 = vrot.lane.b32.xlu0 %v1464, 127
        %v1498 = vpop.permute.xlu0 %1497
        %1499 = vrot.lane.b32.xlu0 %v1465, 127
        %v1500 = vpop.permute.xlu0 %1499
        %1501 = vrot.lane.b32.xlu0 %v1466, 127
        %v1502 = vpop.permute.xlu0 %1501
        %v1503 = vsel %vm356, %v1480, %v1482
        %v1504 = vsel %vm356, %v1482, %v1484
        %v1505 = vsel %vm356, %v1486, %v1488
        %v1506 = vsel %vm356, %v1488, %v1490
        %v1507 = vsel %vm356, %v1492, %v1494
        %v1508 = vsel %vm356, %v1494, %v1496
        %v1509 = vsel %vm356, %v1498, %v1500
        %v1510 = vsel %vm356, %v1500, %v1502
        %1523 = vrot.lane.b32.xlu0 %v1455, 126
        %v1524 = vpop.permute.xlu0 %1523
        %1525 = vrot.lane.b32.xlu0 %v1456, 126
        %v1526 = vpop.permute.xlu0 %1525
        %1527 = vrot.lane.b32.xlu0 %v1457, 126
        %v1528 = vpop.permute.xlu0 %1527
        %1529 = vrot.lane.b32.xlu0 %v1458, 126
        %v1530 = vpop.permute.xlu0 %1529
        %1531 = vrot.lane.b32.xlu0 %v1459, 126
        %v1532 = vpop.permute.xlu0 %1531
        %1533 = vrot.lane.b32.xlu0 %v1460, 126
        %v1534 = vpop.permute.xlu0 %1533
        %1535 = vrot.lane.b32.xlu0 %v1461, 126
        %v1536 = vpop.permute.xlu0 %1535
        %1537 = vrot.lane.b32.xlu0 %v1462, 126
        %v1538 = vpop.permute.xlu0 %1537
        %1539 = vrot.lane.b32.xlu0 %v1463, 126
        %v1540 = vpop.permute.xlu0 %1539
        %1541 = vrot.lane.b32.xlu0 %v1464, 126
        %v1542 = vpop.permute.xlu0 %1541
        %1543 = vrot.lane.b32.xlu0 %v1465, 126
        %v1544 = vpop.permute.xlu0 %1543
        %1545 = vrot.lane.b32.xlu0 %v1466, 126
        %v1546 = vpop.permute.xlu0 %1545
        %v1547 = vsel %vm401, %v1524, %v1526
        %v1548 = vsel %vm401, %v1526, %v1528
        %v1549 = vsel %vm401, %v1530, %v1532
        %v1550 = vsel %vm401, %v1532, %v1534
        %v1551 = vsel %vm401, %v1536, %v1538
        %v1552 = vsel %vm401, %v1538, %v1540
        %v1553 = vsel %vm401, %v1542, %v1544
        %v1554 = vsel %vm401, %v1544, %v1546
        %v1567 = vld [vmem:[#allocation9] sm:$0xff]
        %v1568 = vld [vmem:[#allocation9 + $0x8] sm:$0xff]
        %v1569 = vld [vmem:[#allocation9 + $0x10] sm:$0xff]
        %v1570 = vld [vmem:[#allocation9 + $0x18] sm:$0xff]
        %v1571 = vld [vmem:[#allocation9 + $0x20] sm:$0xff]
        %v1572 = vld [vmem:[#allocation9 + $0x28] sm:$0xff]
        %v1573 = vld [vmem:[#allocation9 + $0x30] sm:$0xff]
        %v1574 = vld [vmem:[#allocation9 + $0x38] sm:$0xff]
        %s1575 = scalar_lea.vmem [#allocation9], 64
        %v1576 = vld [vmem:[%s1575] sm:$0xff]
        %v1577 = vld [vmem:[%s1575 + $0x8] sm:$0xff]
        %v1578 = vld [vmem:[%s1575 + $0x10] sm:$0xff]
        %v1579 = vld [vmem:[%s1575 + $0x18] sm:$0xff]
        %v1580 = vld [vmem:[%s1575 + $0x20] sm:$0xff]
        %v1581 = vld [vmem:[%s1575 + $0x28] sm:$0xff]
        %v1582 = vld [vmem:[%s1575 + $0x30] sm:$0xff]
        %v1583 = vld [vmem:[%s1575 + $0x38] sm:$0xff]
        %v1592 = vunpack.c.l.b16 %v1576
        %v1593 = vunpack.c.h.b16 %v1576
        %v1594 = vunpack.c.l.b16 %v1577
        %v1595 = vunpack.c.h.b16 %v1577
        %v1596 = vunpack.c.l.b16 %v1578
        %v1597 = vunpack.c.h.b16 %v1578
        %v1598 = vunpack.c.l.b16 %v1579
        %v1599 = vunpack.c.h.b16 %v1579
        %v1600 = vunpack.c.l.b16 %v1580
        %v1601 = vunpack.c.h.b16 %v1580
        %v1602 = vunpack.c.l.b16 %v1581
        %v1603 = vunpack.c.h.b16 %v1581
        %v1604 = vunpack.c.l.b16 %v1582
        %v1605 = vunpack.c.h.b16 %v1582
        %v1606 = vunpack.c.l.b16 %v1583
        %v1607 = vunpack.c.h.b16 %v1583
        %v1608 = vpack.c.b16 %v1594, %v1592
        %v1609 = vpack.c.b16 %v1595, %v1593
        %v1610 = vpack.c.b16 %v1598, %v1596
        %v1611 = vpack.c.b16 %v1599, %v1597
        %v1612 = vpack.c.b16 %v1602, %v1600
        %v1613 = vpack.c.b16 %v1603, %v1601
        %v1614 = vpack.c.b16 %v1606, %v1604
        %v1615 = vpack.c.b16 %v1607, %v1605
        %1620 = vrot.lane.b32.xlu0 %v1455, 110
        %v1621 = vpop.permute.xlu0 %1620
        %1622 = vrot.lane.b32.xlu0 %v1456, 110
        %v1623 = vpop.permute.xlu0 %1622
        %1624 = vrot.lane.b32.xlu0 %v1457, 110
        %v1625 = vpop.permute.xlu0 %1624
        %1626 = vrot.lane.b32.xlu0 %v1458, 110
        %v1627 = vpop.permute.xlu0 %1626
        %1628 = vrot.lane.b32.xlu0 %v1459, 110
        %v1629 = vpop.permute.xlu0 %1628
        %1630 = vrot.lane.b32.xlu0 %v1460, 110
        %v1631 = vpop.permute.xlu0 %1630
        %1632 = vrot.lane.b32.xlu0 %v1461, 110
        %v1633 = vpop.permute.xlu0 %1632
        %1634 = vrot.lane.b32.xlu0 %v1462, 110
        %v1635 = vpop.permute.xlu0 %1634
        %1636 = vrot.lane.b32.xlu0 %v1463, 110
        %v1637 = vpop.permute.xlu0 %1636
        %1638 = vrot.lane.b32.xlu0 %v1464, 110
        %v1639 = vpop.permute.xlu0 %1638
        %1640 = vrot.lane.b32.xlu0 %v1465, 110
        %v1641 = vpop.permute.xlu0 %1640
        %1642 = vrot.lane.b32.xlu0 %v1466, 110
        %v1643 = vpop.permute.xlu0 %1642
        %1644 = vrot.lane.b32.xlu0 %v1503, 110
        %v1645 = vpop.permute.xlu0 %1644
        %1646 = vrot.lane.b32.xlu0 %v1504, 110
        %v1647 = vpop.permute.xlu0 %1646
        %1648 = vrot.lane.b32.xlu0 %v1484, 110
        %v1649 = vpop.permute.xlu0 %1648
        %1650 = vrot.lane.b32.xlu0 %v1505, 110
        %v1651 = vpop.permute.xlu0 %1650
        %1652 = vrot.lane.b32.xlu0 %v1506, 110
        %v1653 = vpop.permute.xlu0 %1652
        %1654 = vrot.lane.b32.xlu0 %v1490, 110
        %v1655 = vpop.permute.xlu0 %1654
        %1656 = vrot.lane.b32.xlu0 %v1507, 110
        %v1657 = vpop.permute.xlu0 %1656
        %1658 = vrot.lane.b32.xlu0 %v1508, 110
        %v1659 = vpop.permute.xlu0 %1658
        %1660 = vrot.lane.b32.xlu0 %v1496, 110
        %v1661 = vpop.permute.xlu0 %1660
        %1662 = vrot.lane.b32.xlu0 %v1509, 110
        %v1663 = vpop.permute.xlu0 %1662
        %1664 = vrot.lane.b32.xlu0 %v1510, 110
        %v1665 = vpop.permute.xlu0 %1664
        %1666 = vrot.lane.b32.xlu0 %v1502, 110
        %v1667 = vpop.permute.xlu0 %1666
        %1668 = vrot.lane.b32.xlu0 %v1547, 110
        %v1669 = vpop.permute.xlu0 %1668
        %1670 = vrot.lane.b32.xlu0 %v1548, 110
        %v1671 = vpop.permute.xlu0 %1670
        %1672 = vrot.lane.b32.xlu0 %v1528, 110
        %v1673 = vpop.permute.xlu0 %1672
        %1674 = vrot.lane.b32.xlu0 %v1549, 110
        %v1675 = vpop.permute.xlu0 %1674
        %1676 = vrot.lane.b32.xlu0 %v1550, 110
        %v1677 = vpop.permute.xlu0 %1676
        %1678 = vrot.lane.b32.xlu0 %v1534, 110
        %v1679 = vpop.permute.xlu0 %1678
        %1680 = vrot.lane.b32.xlu0 %v1551, 110
        %v1681 = vpop.permute.xlu0 %1680
        %1682 = vrot.lane.b32.xlu0 %v1552, 110
        %v1683 = vpop.permute.xlu0 %1682
        %1684 = vrot.lane.b32.xlu0 %v1540, 110
        %v1685 = vpop.permute.xlu0 %1684
        %1686 = vrot.lane.b32.xlu0 %v1553, 110
        %v1687 = vpop.permute.xlu0 %1686
        %1688 = vrot.lane.b32.xlu0 %v1554, 110
        %v1689 = vpop.permute.xlu0 %1688
        %1690 = vrot.lane.b32.xlu0 %v1546, 110
        %v1691 = vpop.permute.xlu0 %1690
        %v1692 = vsel %vm547, %v1621, %v1623
        %v1693 = vsel %vm547, %v1623, %v1625
        %v1694 = vsel %vm547, %v1627, %v1629
        %v1695 = vsel %vm547, %v1629, %v1631
        %v1696 = vsel %vm547, %v1633, %v1635
        %v1697 = vsel %vm547, %v1635, %v1637
        %v1698 = vsel %vm547, %v1639, %v1641
        %v1699 = vsel %vm547, %v1641, %v1643
        %v1700 = vsel %vm547, %v1645, %v1647
        %v1701 = vsel %vm547, %v1647, %v1649
        %v1702 = vsel %vm547, %v1651, %v1653
        %v1703 = vsel %vm547, %v1653, %v1655
        %v1704 = vsel %vm547, %v1657, %v1659
        %v1705 = vsel %vm547, %v1659, %v1661
        %v1706 = vsel %vm547, %v1663, %v1665
        %v1707 = vsel %vm547, %v1665, %v1667
        %v1708 = vsel %vm547, %v1669, %v1671
        %v1709 = vsel %vm547, %v1671, %v1673
        %v1710 = vsel %vm547, %v1675, %v1677
        %v1711 = vsel %vm547, %v1677, %v1679
        %v1712 = vsel %vm547, %v1681, %v1683
        %v1713 = vsel %vm547, %v1683, %v1685
        %v1714 = vsel %vm547, %v1687, %v1689
        %v1715 = vsel %vm547, %v1689, %v1691
        %v1753 = vsel %vm608, %v1609, 0
        %v1756 = vsel %vm608, %v1611, 0
        %v1759 = vsel %vm608, %v1613, 0
        %v1762 = vsel %vm608, %v1615, 0
        %1764 = vmatprep.subr.bf16.mxu0 %v1693
        %1765 = vmatpush1.bf16.msra.mxu0 %v1692
        %1766 = vmatprep.subr.bf16.mxu0 %v1695
        %1767 = vmatpush1.bf16.msra.mxu0 %v1694
        %1768 = vmatprep.subr.bf16.mxu0 %v1697
        %1769 = vmatpush1.bf16.msra.mxu0 %v1696
        %1770 = vmatprep.subr.bf16.mxu0 %v1699
        %1771 = vmatpush1.bf16.msra.mxu0 %v1698
        %1772 = vmatprep.subr.bf16.mxu0 %v1701
        %1773 = vmatpush1.bf16.msra.mxu0 %v1700
        %1774 = vmatprep.subr.bf16.mxu0 %v1703
        %1775 = vmatpush1.bf16.msra.mxu0 %v1702
        %1776 = vmatprep.subr.bf16.mxu0 %v1705
        %1777 = vmatpush1.bf16.msra.mxu0 %v1704
        %1778 = vmatprep.subr.bf16.mxu0 %v1707
        %1779 = vmatpush1.bf16.msra.mxu0 %v1706
        %1780 = vmatprep.subr.bf16.mxu0 %v1709
        %1781 = vmatpush1.bf16.msra.mxu0 %v1708
        %1782 = vmatprep.subr.bf16.mxu0 %v1711
        %1783 = vmatpush1.bf16.msra.mxu0 %v1710
        %1784 = vmatprep.subr.bf16.mxu0 %v1713
        %1785 = vmatpush1.bf16.msra.mxu0 %v1712
        %1786 = vmatprep.subr.bf16.mxu0 %v1715
        %1787 = vmatpush1.bf16.msra.mxu0 %v1714
        %1788 = vmatprep.subr.bf16.mxu0 0
        %1789 = vmatpush1.bf16.msra.mxu0 0
        %1790 = vmatprep.subr.bf16.mxu0 0
        %1791 = vmatpush1.bf16.msra.mxu0 0
        %1792 = vmatprep.subr.bf16.mxu0 0
        %1793 = vmatpush1.bf16.msra.mxu0 0
        %1794 = vmatprep.subr.bf16.mxu0 0
        %1795 = vmatpush1.bf16.msra.mxu0 0
        %1796 = vmatprep.mubr.bf16.mxu0 %v1753
        %1797 = vmatmul.mubr.bf16.gmra.mrb[0].mxu0 %v1608
        %v1798 = vpop.f32.mrb[0].mxu0
        %v1799 = vadd.f32 0.0, %v1798
        %v1800 = vpop.f32.mrb[0].mxu0
        %v1801 = vadd.f32 0.0, %v1800
        %v1802 = vpop.f32.mrb[0].mxu0
        %v1803 = vadd.f32 0.0, %v1802
        %v1804 = vpop.f32.mrb[0].mxu0
        %v1805 = vadd.f32 0.0, %v1804
        %1806 = vmatprep.mubr.bf16.mxu0 %v1756
        %1807 = vmatmul.mubr.bf16.gmra.mrb[0].mxu0 %v1610
        %v1808 = vpop.f32.mrb[0].mxu0
        %v1809 = vadd.f32 0.0, %v1808
        %v1810 = vpop.f32.mrb[0].mxu0
        %v1811 = vadd.f32 0.0, %v1810
        %v1812 = vpop.f32.mrb[0].mxu0
        %v1813 = vadd.f32 0.0, %v1812
        %v1814 = vpop.f32.mrb[0].mxu0
        %v1815 = vadd.f32 0.0, %v1814
        %1816 = vmatprep.mubr.bf16.mxu0 %v1759
        %1817 = vmatmul.mubr.bf16.gmra.mrb[0].mxu0 %v1612
        %v1818 = vpop.f32.mrb[0].mxu0
        %v1819 = vadd.f32 0.0, %v1818
        %v1820 = vpop.f32.mrb[0].mxu0
        %v1821 = vadd.f32 0.0, %v1820
        %v1822 = vpop.f32.mrb[0].mxu0
        %v1823 = vadd.f32 0.0, %v1822
        %v1824 = vpop.f32.mrb[0].mxu0
        %v1825 = vadd.f32 0.0, %v1824
        %1826 = vmatprep.mubr.bf16.mxu0 %v1762
        %1827 = vmatmul.mubr.bf16.gmra.mrb[0].mxu0 %v1614
        %v1828 = vpop.f32.mrb[0].mxu0
        %v1829 = vadd.f32 0.0, %v1828
        %v1830 = vpop.f32.mrb[0].mxu0
        %v1831 = vadd.f32 0.0, %v1830
        %v1832 = vpop.f32.mrb[0].mxu0
        %v1833 = vadd.f32 0.0, %v1832
        %v1834 = vpop.f32.mrb[0].mxu0
        %v1835 = vadd.f32 0.0, %v1834
        %1836 = vdwg.mxu0
        %1837 = vmatprep.subr.bf16.mxu0 0
        %1838 = vmatpush1.bf16.msra.mxu0 %v1625
        %1839 = vmatprep.subr.bf16.mxu0 0
        %1840 = vmatpush1.bf16.msra.mxu0 %v1631
        %1841 = vmatprep.subr.bf16.mxu0 0
        %1842 = vmatpush1.bf16.msra.mxu0 %v1637
        %1843 = vmatprep.subr.bf16.mxu0 0
        %1844 = vmatpush1.bf16.msra.mxu0 %v1643
        %1845 = vmatprep.subr.bf16.mxu0 0
        %1846 = vmatpush1.bf16.msra.mxu0 %v1649
        %1847 = vmatprep.subr.bf16.mxu0 0
        %1848 = vmatpush1.bf16.msra.mxu0 %v1655
        %1849 = vmatprep.subr.bf16.mxu0 0
        %1850 = vmatpush1.bf16.msra.mxu0 %v1661
        %1851 = vmatprep.subr.bf16.mxu0 0
        %1852 = vmatpush1.bf16.msra.mxu0 %v1667
        %1853 = vmatprep.subr.bf16.mxu0 0
        %1854 = vmatpush1.bf16.msra.mxu0 %v1673
        %1855 = vmatprep.subr.bf16.mxu0 0
        %1856 = vmatpush1.bf16.msra.mxu0 %v1679
        %1857 = vmatprep.subr.bf16.mxu0 0
        %1858 = vmatpush1.bf16.msra.mxu0 %v1685
        %1859 = vmatprep.subr.bf16.mxu0 0
        %1860 = vmatpush1.bf16.msra.mxu0 %v1691
        %1861 = vmatprep.subr.bf16.mxu0 0
        %1862 = vmatpush1.bf16.msra.mxu0 0
        %1863 = vmatprep.subr.bf16.mxu0 0
        %1864 = vmatpush1.bf16.msra.mxu0 0
        %1865 = vmatprep.subr.bf16.mxu0 0
        %1866 = vmatpush1.bf16.msra.mxu0 0
        %1867 = vmatprep.subr.bf16.mxu0 0
        %1868 = vmatpush1.bf16.msra.mxu0 0
        %1869 = vmatprep.mubr.bf16.mxu0 %v1753
        %1870 = vmatmul.mubr.bf16.gmra.mrb[0].mxu0 %v1608
        %v1871 = vpop.f32.mrb[0].mxu0
        %v1872 = vadd.f32 0.0, %v1871
        %v1873 = vpop.f32.mrb[0].mxu0
        %v1874 = vpop.f32.mrb[0].mxu0
        %v1875 = vadd.f32 0.0, %v1874
        %v1876 = vpop.f32.mrb[0].mxu0
        %1877 = vmatprep.mubr.bf16.mxu0 %v1756
        %1878 = vmatmul.mubr.bf16.gmra.mrb[0].mxu0 %v1610
        %v1879 = vpop.f32.mrb[0].mxu0
        %v1880 = vadd.f32 0.0, %v1879
        %v1881 = vpop.f32.mrb[0].mxu0
        %v1882 = vpop.f32.mrb[0].mxu0
        %v1883 = vadd.f32 0.0, %v1882
        %v1884 = vpop.f32.mrb[0].mxu0
        %1885 = vmatprep.mubr.bf16.mxu0 %v1759
        %1886 = vmatmul.mubr.bf16.gmra.mrb[0].mxu0 %v1612
        %v1887 = vpop.f32.mrb[0].mxu0
        %v1888 = vadd.f32 0.0, %v1887
        %v1889 = vpop.f32.mrb[0].mxu0
        %v1890 = vpop.f32.mrb[0].mxu0
        %v1891 = vadd.f32 0.0, %v1890
        %v1892 = vpop.f32.mrb[0].mxu0
        %1893 = vmatprep.mubr.bf16.mxu0 %v1762
        %1894 = vmatmul.mubr.bf16.gmra.mrb[0].mxu0 %v1614
        %v1895 = vpop.f32.mrb[0].mxu0
        %v1896 = vadd.f32 0.0, %v1895
        %v1897 = vpop.f32.mrb[0].mxu0
        %v1898 = vpop.f32.mrb[0].mxu0
        %v1899 = vadd.f32 0.0, %v1898
        %v1900 = vpop.f32.mrb[0].mxu0
        %1901 = vdwg.mxu0
        %v1910 = vunpack.c.l.b16 %v1567
        %v1911 = vunpack.c.h.b16 %v1567
        %v1912 = vunpack.c.l.b16 %v1568
        %v1913 = vunpack.c.h.b16 %v1568
        %v1914 = vunpack.c.l.b16 %v1569
        %v1915 = vunpack.c.h.b16 %v1569
        %v1916 = vunpack.c.l.b16 %v1570
        %v1917 = vunpack.c.h.b16 %v1570
        %v1918 = vunpack.c.l.b16 %v1571
        %v1919 = vunpack.c.h.b16 %v1571
        %v1920 = vunpack.c.l.b16 %v1572
        %v1921 = vunpack.c.h.b16 %v1572
        %v1922 = vunpack.c.l.b16 %v1573
        %v1923 = vunpack.c.h.b16 %v1573
        %v1924 = vunpack.c.l.b16 %v1574
        %v1925 = vunpack.c.h.b16 %v1574
        %v1926 = vpack.c.b16 %v1912, %v1910
        %v1927 = vpack.c.b16 %v1913, %v1911
        %v1928 = vpack.c.b16 %v1916, %v1914
        %v1929 = vpack.c.b16 %v1917, %v1915
        %v1930 = vpack.c.b16 %v1920, %v1918
        %v1931 = vpack.c.b16 %v1921, %v1919
        %v1932 = vpack.c.b16 %v1924, %v1922
        %v1933 = vpack.c.b16 %v1925, %v1923
        %v1939 = vsel %vm608, %v1927, 0
        %v1942 = vsel %vm608, %v1929, 0
        %v1945 = vsel %vm608, %v1931, 0
        %v1948 = vsel %vm608, %v1933, 0
        %1950 = vmatprep.subr.bf16.mxu0 %v1456
        %1951 = vmatpush1.bf16.msra.mxu0 %v1455
        %1952 = vmatprep.subr.bf16.mxu0 %v1459
        %1953 = vmatpush1.bf16.msra.mxu0 %v1458
        %1954 = vmatprep.subr.bf16.mxu0 %v1462
        %1955 = vmatpush1.bf16.msra.mxu0 %v1461
        %1956 = vmatprep.subr.bf16.mxu0 %v1465
        %1957 = vmatpush1.bf16.msra.mxu0 %v1464
        %1958 = vmatprep.subr.bf16.mxu0 %v1504
        %1959 = vmatpush1.bf16.msra.mxu0 %v1503
        %1960 = vmatprep.subr.bf16.mxu0 %v1506
        %1961 = vmatpush1.bf16.msra.mxu0 %v1505
        %1962 = vmatprep.subr.bf16.mxu0 %v1508
        %1963 = vmatpush1.bf16.msra.mxu0 %v1507
        %1964 = vmatprep.subr.bf16.mxu0 %v1510
        %1965 = vmatpush1.bf16.msra.mxu0 %v1509
        %1966 = vmatprep.subr.bf16.mxu0 %v1548
        %1967 = vmatpush1.bf16.msra.mxu0 %v1547
        %1968 = vmatprep.subr.bf16.mxu0 %v1550
        %1969 = vmatpush1.bf16.msra.mxu0 %v1549
        %1970 = vmatprep.subr.bf16.mxu0 %v1552
        %1971 = vmatpush1.bf16.msra.mxu0 %v1551
        %1972 = vmatprep.subr.bf16.mxu0 %v1554
        %1973 = vmatpush1.bf16.msra.mxu0 %v1553
        %1974 = vmatprep.subr.bf16.mxu0 0
        %1975 = vmatpush1.bf16.msra.mxu0 0
        %1976 = vmatprep.subr.bf16.mxu0 0
        %1977 = vmatpush1.bf16.msra.mxu0 0
        %1978 = vmatprep.subr.bf16.mxu0 0
        %1979 = vmatpush1.bf16.msra.mxu0 0
        %1980 = vmatprep.subr.bf16.mxu0 0
        %1981 = vmatpush1.bf16.msra.mxu0 0
        %1982 = vmatprep.mubr.bf16.mxu0 %v1939
        %1983 = vmatmul.mubr.bf16.gmra.mrb[0].mxu0 %v1926
        %v1984 = vpop.f32.mrb[0].mxu0
        %v1985 = vadd.f32 %v1799, %v1984
        %v1986 = vpop.f32.mrb[0].mxu0
        %v1987 = vadd.f32 %v1801, %v1986
        %v1988 = vpop.f32.mrb[0].mxu0
        %v1989 = vadd.f32 %v1803, %v1988
        %v1990 = vpop.f32.mrb[0].mxu0
        %v1991 = vadd.f32 %v1805, %v1990
        %1992 = vmatprep.mubr.bf16.mxu0 %v1942
        %1993 = vmatmul.mubr.bf16.gmra.mrb[0].mxu0 %v1928
        %v1994 = vpop.f32.mrb[0].mxu0
        %v1995 = vadd.f32 %v1809, %v1994
        %v1996 = vpop.f32.mrb[0].mxu0
        %v1997 = vadd.f32 %v1811, %v1996
        %v1998 = vpop.f32.mrb[0].mxu0
        %v1999 = vadd.f32 %v1813, %v1998
        %v2000 = vpop.f32.mrb[0].mxu0
        %v2001 = vadd.f32 %v1815, %v2000
        %2002 = vmatprep.mubr.bf16.mxu0 %v1945
        %2003 = vmatmul.mubr.bf16.gmra.mrb[0].mxu0 %v1930
        %v2004 = vpop.f32.mrb[0].mxu0
        %v2005 = vadd.f32 %v1819, %v2004
        %v2006 = vpop.f32.mrb[0].mxu0
        %v2007 = vadd.f32 %v1821, %v2006
        %v2008 = vpop.f32.mrb[0].mxu0
        %v2009 = vadd.f32 %v1823, %v2008
        %v2010 = vpop.f32.mrb[0].mxu0
        %v2011 = vadd.f32 %v1825, %v2010
        %2012 = vmatprep.mubr.bf16.mxu0 %v1948
        %2013 = vmatmul.mubr.bf16.gmra.mrb[0].mxu0 %v1932
        %v2014 = vpop.f32.mrb[0].mxu0
        %v2015 = vadd.f32 %v1829, %v2014
        %v2016 = vpop.f32.mrb[0].mxu0
        %v2017 = vadd.f32 %v1831, %v2016
        %v2018 = vpop.f32.mrb[0].mxu0
        %v2019 = vadd.f32 %v1833, %v2018
        %v2020 = vpop.f32.mrb[0].mxu0
        %v2021 = vadd.f32 %v1835, %v2020
        %2022 = vdwg.mxu0
        %2023 = vmatprep.subr.bf16.mxu0 0
        %2024 = vmatpush1.bf16.msra.mxu0 %v1457
        %2025 = vmatprep.subr.bf16.mxu0 0
        %2026 = vmatpush1.bf16.msra.mxu0 %v1460
        %2027 = vmatprep.subr.bf16.mxu0 0
        %2028 = vmatpush1.bf16.msra.mxu0 %v1463
        %2029 = vmatprep.subr.bf16.mxu0 0
        %2030 = vmatpush1.bf16.msra.mxu0 %v1466
        %2031 = vmatprep.subr.bf16.mxu0 0
        %2032 = vmatpush1.bf16.msra.mxu0 %v1484
        %2033 = vmatprep.subr.bf16.mxu0 0
        %2034 = vmatpush1.bf16.msra.mxu0 %v1490
        %2035 = vmatprep.subr.bf16.mxu0 0
        %2036 = vmatpush1.bf16.msra.mxu0 %v1496
        %2037 = vmatprep.subr.bf16.mxu0 0
        %2038 = vmatpush1.bf16.msra.mxu0 %v1502
        %2039 = vmatprep.subr.bf16.mxu0 0
        %2040 = vmatpush1.bf16.msra.mxu0 %v1528
        %2041 = vmatprep.subr.bf16.mxu0 0
        %2042 = vmatpush1.bf16.msra.mxu0 %v1534
        %2043 = vmatprep.subr.bf16.mxu0 0
        %2044 = vmatpush1.bf16.msra.mxu0 %v1540
        %2045 = vmatprep.subr.bf16.mxu0 0
        %2046 = vmatpush1.bf16.msra.mxu0 %v1546
        %2047 = vmatprep.subr.bf16.mxu0 0
        %2048 = vmatpush1.bf16.msra.mxu0 0
        %2049 = vmatprep.subr.bf16.mxu0 0
        %2050 = vmatpush1.bf16.msra.mxu0 0
        %2051 = vmatprep.subr.bf16.mxu0 0
        %2052 = vmatpush1.bf16.msra.mxu0 0
        %2053 = vmatprep.subr.bf16.mxu0 0
        %2054 = vmatpush1.bf16.msra.mxu0 0
        %2055 = vmatprep.mubr.bf16.mxu0 %v1939
        %2056 = vmatmul.mubr.bf16.gmra.mrb[0].mxu0 %v1926
        %v2057 = vpop.f32.mrb[0].mxu0
        %v2058 = vadd.f32 %v1872, %v2057
        %v2059 = vpop.f32.mrb[0].mxu0
        %v2060 = vpop.f32.mrb[0].mxu0
        %v2061 = vadd.f32 %v1875, %v2060
        %v2062 = vpop.f32.mrb[0].mxu0
        %2063 = vmatprep.mubr.bf16.mxu0 %v1942
        %2064 = vmatmul.mubr.bf16.gmra.mrb[0].mxu0 %v1928
        %v2065 = vpop.f32.mrb[0].mxu0
        %v2066 = vadd.f32 %v1880, %v2065
        %v2067 = vpop.f32.mrb[0].mxu0
        %v2068 = vpop.f32.mrb[0].mxu0
        %v2069 = vadd.f32 %v1883, %v2068
        %v2070 = vpop.f32.mrb[0].mxu0
        %2071 = vmatprep.mubr.bf16.mxu0 %v1945
        %2072 = vmatmul.mubr.bf16.gmra.mrb[0].mxu0 %v1930
        %v2073 = vpop.f32.mrb[0].mxu0
        %v2074 = vadd.f32 %v1888, %v2073
        %v2075 = vpop.f32.mrb[0].mxu0
        %v2076 = vpop.f32.mrb[0].mxu0
        %v2077 = vadd.f32 %v1891, %v2076
        %v2078 = vpop.f32.mrb[0].mxu0
        %2079 = vmatprep.mubr.bf16.mxu0 %v1948
        %2080 = vmatmul.mubr.bf16.gmra.mrb[0].mxu0 %v1932
        %v2081 = vpop.f32.mrb[0].mxu0
        %v2082 = vadd.f32 %v1896, %v2081
        %v2083 = vpop.f32.mrb[0].mxu0
        %v2084 = vpop.f32.mrb[0].mxu0
        %v2085 = vadd.f32 %v1899, %v2084
        %v2086 = vpop.f32.mrb[0].mxu0
        %2087 = vdwg.mxu0
        %s2088 = scalar_lea.vmem [#allocation9], 128
        %v2089 = vld [vmem:[%s2088] sm:$0xff]
        %v2090 = vld [vmem:[%s2088 + $0x8] sm:$0xff]
        %v2091 = vld [vmem:[%s2088 + $0x10] sm:$0xff]
        %v2092 = vld [vmem:[%s2088 + $0x18] sm:$0xff]
        %v2093 = vld [vmem:[%s2088 + $0x20] sm:$0xff]
        %v2094 = vld [vmem:[%s2088 + $0x28] sm:$0xff]
        %v2095 = vld [vmem:[%s2088 + $0x30] sm:$0xff]
        %v2096 = vld [vmem:[%s2088 + $0x38] sm:$0xff]
        %v2105 = vunpack.c.l.b16 %v2089
        %v2106 = vunpack.c.h.b16 %v2089
        %v2107 = vunpack.c.l.b16 %v2090
        %v2108 = vunpack.c.h.b16 %v2090
        %v2109 = vunpack.c.l.b16 %v2091
        %v2110 = vunpack.c.h.b16 %v2091
        %v2111 = vunpack.c.l.b16 %v2092
        %v2112 = vunpack.c.h.b16 %v2092
        %v2113 = vunpack.c.l.b16 %v2093
        %v2114 = vunpack.c.h.b16 %v2093
        %v2115 = vunpack.c.l.b16 %v2094
        %v2116 = vunpack.c.h.b16 %v2094
        %v2117 = vunpack.c.l.b16 %v2095
        %v2118 = vunpack.c.h.b16 %v2095
        %v2119 = vunpack.c.l.b16 %v2096
        %v2120 = vunpack.c.h.b16 %v2096
        %v2121 = vpack.c.b16 %v2107, %v2105
        %v2122 = vpack.c.b16 %v2108, %v2106
        %v2123 = vpack.c.b16 %v2111, %v2109
        %v2124 = vpack.c.b16 %v2112, %v2110
        %v2125 = vpack.c.b16 %v2115, %v2113
        %v2126 = vpack.c.b16 %v2116, %v2114
        %v2127 = vpack.c.b16 %v2119, %v2117
        %v2128 = vpack.c.b16 %v2120, %v2118
        %2133 = vrot.lane.b32.xlu0 %v1455, 92
        %v2134 = vpop.permute.xlu0 %2133
        %2135 = vrot.lane.b32.xlu0 %v1456, 92
        %v2136 = vpop.permute.xlu0 %2135
        %2137 = vrot.lane.b32.xlu0 %v1457, 92
        %v2138 = vpop.permute.xlu0 %2137
        %2139 = vrot.lane.b32.xlu0 %v1458, 92
        %v2140 = vpop.permute.xlu0 %2139
        %2141 = vrot.lane.b32.xlu0 %v1459, 92
        %v2142 = vpop.permute.xlu0 %2141
        %2143 = vrot.lane.b32.xlu0 %v1460, 92
        %v2144 = vpop.permute.xlu0 %2143
        %2145 = vrot.lane.b32.xlu0 %v1461, 92
        %v2146 = vpop.permute.xlu0 %2145
        %2147 = vrot.lane.b32.xlu0 %v1462, 92
        %v2148 = vpop.permute.xlu0 %2147
        %2149 = vrot.lane.b32.xlu0 %v1463, 92
        %v2150 = vpop.permute.xlu0 %2149
        %2151 = vrot.lane.b32.xlu0 %v1464, 92
        %v2152 = vpop.permute.xlu0 %2151
        %2153 = vrot.lane.b32.xlu0 %v1465, 92
        %v2154 = vpop.permute.xlu0 %2153
        %2155 = vrot.lane.b32.xlu0 %v1466, 92
        %v2156 = vpop.permute.xlu0 %2155
        %2157 = vrot.lane.b32.xlu0 %v1503, 92
        %v2158 = vpop.permute.xlu0 %2157
        %2159 = vrot.lane.b32.xlu0 %v1504, 92
        %v2160 = vpop.permute.xlu0 %2159
        %2161 = vrot.lane.b32.xlu0 %v1484, 92
        %v2162 = vpop.permute.xlu0 %2161
        %2163 = vrot.lane.b32.xlu0 %v1505, 92
        %v2164 = vpop.permute.xlu0 %2163
        %2165 = vrot.lane.b32.xlu0 %v1506, 92
        %v2166 = vpop.permute.xlu0 %2165
        %2167 = vrot.lane.b32.xlu0 %v1490, 92
        %v2168 = vpop.permute.xlu0 %2167
        %2169 = vrot.lane.b32.xlu0 %v1507, 92
        %v2170 = vpop.permute.xlu0 %2169
        %2171 = vrot.lane.b32.xlu0 %v1508, 92
        %v2172 = vpop.permute.xlu0 %2171
        %2173 = vrot.lane.b32.xlu0 %v1496, 92
        %v2174 = vpop.permute.xlu0 %2173
        %2175 = vrot.lane.b32.xlu0 %v1509, 92
        %v2176 = vpop.permute.xlu0 %2175
        %2177 = vrot.lane.b32.xlu0 %v1510, 92
        %v2178 = vpop.permute.xlu0 %2177
        %2179 = vrot.lane.b32.xlu0 %v1502, 92
        %v2180 = vpop.permute.xlu0 %2179
        %2181 = vrot.lane.b32.xlu0 %v1547, 92
        %v2182 = vpop.permute.xlu0 %2181
        %2183 = vrot.lane.b32.xlu0 %v1548, 92
        %v2184 = vpop.permute.xlu0 %2183
        %2185 = vrot.lane.b32.xlu0 %v1528, 92
        %v2186 = vpop.permute.xlu0 %2185
        %2187 = vrot.lane.b32.xlu0 %v1549, 92
        %v2188 = vpop.permute.xlu0 %2187
        %2189 = vrot.lane.b32.xlu0 %v1550, 92
        %v2190 = vpop.permute.xlu0 %2189
        %2191 = vrot.lane.b32.xlu0 %v1534, 92
        %v2192 = vpop.permute.xlu0 %2191
        %2193 = vrot.lane.b32.xlu0 %v1551, 92
        %v2194 = vpop.permute.xlu0 %2193
        %2195 = vrot.lane.b32.xlu0 %v1552, 92
        %v2196 = vpop.permute.xlu0 %2195
        %2197 = vrot.lane.b32.xlu0 %v1540, 92
        %v2198 = vpop.permute.xlu0 %2197
        %2199 = vrot.lane.b32.xlu0 %v1553, 92
        %v2200 = vpop.permute.xlu0 %2199
        %2201 = vrot.lane.b32.xlu0 %v1554, 92
        %v2202 = vpop.permute.xlu0 %2201
        %2203 = vrot.lane.b32.xlu0 %v1546, 92
        %v2204 = vpop.permute.xlu0 %2203
        %v2205 = vsel %vm1062, %v2134, %v2136
        %v2206 = vsel %vm1062, %v2136, %v2138
        %v2207 = vsel %vm1062, %v2140, %v2142
        %v2208 = vsel %vm1062, %v2142, %v2144
        %v2209 = vsel %vm1062, %v2146, %v2148
        %v2210 = vsel %vm1062, %v2148, %v2150
        %v2211 = vsel %vm1062, %v2152, %v2154
        %v2212 = vsel %vm1062, %v2154, %v2156
        %v2213 = vsel %vm1062, %v2158, %v2160
        %v2214 = vsel %vm1062, %v2160, %v2162
        %v2215 = vsel %vm1062, %v2164, %v2166
        %v2216 = vsel %vm1062, %v2166, %v2168
        %v2217 = vsel %vm1062, %v2170, %v2172
        %v2218 = vsel %vm1062, %v2172, %v2174
        %v2219 = vsel %vm1062, %v2176, %v2178
        %v2220 = vsel %vm1062, %v2178, %v2180
        %v2221 = vsel %vm1062, %v2182, %v2184
        %v2222 = vsel %vm1062, %v2184, %v2186
        %v2223 = vsel %vm1062, %v2188, %v2190
        %v2224 = vsel %vm1062, %v2190, %v2192
        %v2225 = vsel %vm1062, %v2194, %v2196
        %v2226 = vsel %vm1062, %v2196, %v2198
        %v2227 = vsel %vm1062, %v2200, %v2202
        %v2228 = vsel %vm1062, %v2202, %v2204
        %v2266 = vsel %vm608, %v2122, 0
        %v2269 = vsel %vm608, %v2124, 0
        %v2272 = vsel %vm608, %v2126, 0
        %v2275 = vsel %vm608, %v2128, 0
        %2277 = vmatprep.subr.bf16.mxu0 %v2206
        %2278 = vmatpush1.bf16.msra.mxu0 %v2205
        %2279 = vmatprep.subr.bf16.mxu0 %v2208
        %2280 = vmatpush1.bf16.msra.mxu0 %v2207
        %2281 = vmatprep.subr.bf16.mxu0 %v2210
        %2282 = vmatpush1.bf16.msra.mxu0 %v2209
        %2283 = vmatprep.subr.bf16.mxu0 %v2212
        %2284 = vmatpush1.bf16.msra.mxu0 %v2211
        %2285 = vmatprep.subr.bf16.mxu0 %v2214
        %2286 = vmatpush1.bf16.msra.mxu0 %v2213
        %2287 = vmatprep.subr.bf16.mxu0 %v2216
        %2288 = vmatpush1.bf16.msra.mxu0 %v2215
        %2289 = vmatprep.subr.bf16.mxu0 %v2218
        %2290 = vmatpush1.bf16.msra.mxu0 %v2217
        %2291 = vmatprep.subr.bf16.mxu0 %v2220
        %2292 = vmatpush1.bf16.msra.mxu0 %v2219
        %2293 = vmatprep.subr.bf16.mxu0 %v2222
        %2294 = vmatpush1.bf16.msra.mxu0 %v2221
        %2295 = vmatprep.subr.bf16.mxu0 %v2224
        %2296 = vmatpush1.bf16.msra.mxu0 %v2223
        %2297 = vmatprep.subr.bf16.mxu0 %v2226
        %2298 = vmatpush1.bf16.msra.mxu0 %v2225
        %2299 = vmatprep.subr.bf16.mxu0 %v2228
        %2300 = vmatpush1.bf16.msra.mxu0 %v2227
        %2301 = vmatprep.subr.bf16.mxu0 0
        %2302 = vmatpush1.bf16.msra.mxu0 0
        %2303 = vmatprep.subr.bf16.mxu0 0
        %2304 = vmatpush1.bf16.msra.mxu0 0
        %2305 = vmatprep.subr.bf16.mxu0 0
        %2306 = vmatpush1.bf16.msra.mxu0 0
        %2307 = vmatprep.subr.bf16.mxu0 0
        %2308 = vmatpush1.bf16.msra.mxu0 0
        %2309 = vmatprep.mubr.bf16.mxu0 %v2266
        %2310 = vmatmul.mubr.bf16.gmra.mrb[0].mxu0 %v2121
        %v2311 = vpop.f32.mrb[0].mxu0
        %v2312 = vadd.f32 0.0, %v2311
        %v2313 = vpop.f32.mrb[0].mxu0
        %v2314 = vadd.f32 0.0, %v2313
        %v2315 = vpop.f32.mrb[0].mxu0
        %v2316 = vadd.f32 0.0, %v2315
        %v2317 = vpop.f32.mrb[0].mxu0
        %v2318 = vadd.f32 0.0, %v2317
        %2319 = vmatprep.mubr.bf16.mxu0 %v2269
        %2320 = vmatmul.mubr.bf16.gmra.mrb[0].mxu0 %v2123
        %v2321 = vpop.f32.mrb[0].mxu0
        %v2322 = vadd.f32 0.0, %v2321
        %v2323 = vpop.f32.mrb[0].mxu0
        %v2324 = vadd.f32 0.0, %v2323
        %v2325 = vpop.f32.mrb[0].mxu0
        %v2326 = vadd.f32 0.0, %v2325
        %v2327 = vpop.f32.mrb[0].mxu0
        %v2328 = vadd.f32 0.0, %v2327
        %2329 = vmatprep.mubr.bf16.mxu0 %v2272
        %2330 = vmatmul.mubr.bf16.gmra.mrb[0].mxu0 %v2125
        %v2331 = vpop.f32.mrb[0].mxu0
        %v2332 = vadd.f32 0.0, %v2331
        %v2333 = vpop.f32.mrb[0].mxu0
        %v2334 = vadd.f32 0.0, %v2333
        %v2335 = vpop.f32.mrb[0].mxu0
        %v2336 = vadd.f32 0.0, %v2335
        %v2337 = vpop.f32.mrb[0].mxu0
        %v2338 = vadd.f32 0.0, %v2337
        %2339 = vmatprep.mubr.bf16.mxu0 %v2275
        %2340 = vmatmul.mubr.bf16.gmra.mrb[0].mxu0 %v2127
        %v2341 = vpop.f32.mrb[0].mxu0
        %v2342 = vadd.f32 0.0, %v2341
        %v2343 = vpop.f32.mrb[0].mxu0
        %v2344 = vadd.f32 0.0, %v2343
        %v2345 = vpop.f32.mrb[0].mxu0
        %v2346 = vadd.f32 0.0, %v2345
        %v2347 = vpop.f32.mrb[0].mxu0
        %v2348 = vadd.f32 0.0, %v2347
        %2349 = vdwg.mxu0
        %2350 = vmatprep.subr.bf16.mxu0 0
        %2351 = vmatpush1.bf16.msra.mxu0 %v2138
        %2352 = vmatprep.subr.bf16.mxu0 0
        %2353 = vmatpush1.bf16.msra.mxu0 %v2144
        %2354 = vmatprep.subr.bf16.mxu0 0
        %2355 = vmatpush1.bf16.msra.mxu0 %v2150
        %2356 = vmatprep.subr.bf16.mxu0 0
        %2357 = vmatpush1.bf16.msra.mxu0 %v2156
        %2358 = vmatprep.subr.bf16.mxu0 0
        %2359 = vmatpush1.bf16.msra.mxu0 %v2162
        %2360 = vmatprep.subr.bf16.mxu0 0
        %2361 = vmatpush1.bf16.msra.mxu0 %v2168
        %2362 = vmatprep.subr.bf16.mxu0 0
        %2363 = vmatpush1.bf16.msra.mxu0 %v2174
        %2364 = vmatprep.subr.bf16.mxu0 0
        %2365 = vmatpush1.bf16.msra.mxu0 %v2180
        %2366 = vmatprep.subr.bf16.mxu0 0
        %2367 = vmatpush1.bf16.msra.mxu0 %v2186
        %2368 = vmatprep.subr.bf16.mxu0 0
        %2369 = vmatpush1.bf16.msra.mxu0 %v2192
        %2370 = vmatprep.subr.bf16.mxu0 0
        %2371 = vmatpush1.bf16.msra.mxu0 %v2198
        %2372 = vmatprep.subr.bf16.mxu0 0
        %2373 = vmatpush1.bf16.msra.mxu0 %v2204
        %2374 = vmatprep.subr.bf16.mxu0 0
        %2375 = vmatpush1.bf16.msra.mxu0 0
        %2376 = vmatprep.subr.bf16.mxu0 0
        %2377 = vmatpush1.bf16.msra.mxu0 0
        %2378 = vmatprep.subr.bf16.mxu0 0
        %2379 = vmatpush1.bf16.msra.mxu0 0
        %2380 = vmatprep.subr.bf16.mxu0 0
        %2381 = vmatpush1.bf16.msra.mxu0 0
        %2382 = vmatprep.mubr.bf16.mxu0 %v2266
        %2383 = vmatmul.mubr.bf16.gmra.mrb[0].mxu0 %v2121
        %v2384 = vpop.f32.mrb[0].mxu0
        %v2385 = vadd.f32 0.0, %v2384
        %v2386 = vpop.f32.mrb[0].mxu0
        %v2387 = vpop.f32.mrb[0].mxu0
        %v2388 = vadd.f32 0.0, %v2387
        %v2389 = vpop.f32.mrb[0].mxu0
        %2390 = vmatprep.mubr.bf16.mxu0 %v2269
        %2391 = vmatmul.mubr.bf16.gmra.mrb[0].mxu0 %v2123
        %v2392 = vpop.f32.mrb[0].mxu0
        %v2393 = vadd.f32 0.0, %v2392
        %v2394 = vpop.f32.mrb[0].mxu0
        %v2395 = vpop.f32.mrb[0].mxu0
        %v2396 = vadd.f32 0.0, %v2395
        %v2397 = vpop.f32.mrb[0].mxu0
        %2398 = vmatprep.mubr.bf16.mxu0 %v2272
        %2399 = vmatmul.mubr.bf16.gmra.mrb[0].mxu0 %v2125
        %v2400 = vpop.f32.mrb[0].mxu0
        %v2401 = vadd.f32 0.0, %v2400
        %v2402 = vpop.f32.mrb[0].mxu0
        %v2403 = vpop.f32.mrb[0].mxu0
        %v2404 = vadd.f32 0.0, %v2403
        %v2405 = vpop.f32.mrb[0].mxu0
        %2406 = vmatprep.mubr.bf16.mxu0 %v2275
        %2407 = vmatmul.mubr.bf16.gmra.mrb[0].mxu0 %v2127
        %v2408 = vpop.f32.mrb[0].mxu0
        %v2409 = vadd.f32 0.0, %v2408
        %v2410 = vpop.f32.mrb[0].mxu0
        %v2411 = vpop.f32.mrb[0].mxu0
        %v2412 = vadd.f32 0.0, %v2411
        %v2413 = vpop.f32.mrb[0].mxu0
        %2414 = vdwg.mxu0
        %v2415 = vadd.f32 %v1985, %v2312
        %v2416 = vadd.f32 %v1987, %v2314
        %v2417 = vadd.f32 %v2058, %v2385
        %v2418 = vadd.f32 %v1989, %v2316
        %v2419 = vadd.f32 %v1991, %v2318
        %v2420 = vadd.f32 %v2061, %v2388
        %v2421 = vadd.f32 %v1995, %v2322
        %v2422 = vadd.f32 %v1997, %v2324
        %v2423 = vadd.f32 %v2066, %v2393
        %v2424 = vadd.f32 %v1999, %v2326
        %v2425 = vadd.f32 %v2001, %v2328
        %v2426 = vadd.f32 %v2069, %v2396
        %v2427 = vadd.f32 %v2005, %v2332
        %v2428 = vadd.f32 %v2007, %v2334
        %v2429 = vadd.f32 %v2074, %v2401
        %v2430 = vadd.f32 %v2009, %v2336
        %v2431 = vadd.f32 %v2011, %v2338
        %v2432 = vadd.f32 %v2077, %v2404
        %v2433 = vadd.f32 %v2015, %v2342
        %v2434 = vadd.f32 %v2017, %v2344
        %v2435 = vadd.f32 %v2082, %v2409
        %v2436 = vadd.f32 %v2019, %v2346
        %v2437 = vadd.f32 %v2021, %v2348
        %v2438 = vadd.f32 %v2085, %v2412
        %v2439 = vld [vmem:[%s221] sm:$0xff]
        %v2440 = vld [vmem:[%s221 + $0x8] sm:$0xff]
        %v2441 = vld [vmem:[%s221 + $0x10] sm:$0xff]
        %v2442 = vld [vmem:[%s221 + $0x18] sm:$0xff]
        %v2443 = vld [vmem:[%s221 + $0x20] sm:$0xff]
        %v2444 = vld [vmem:[%s221 + $0x28] sm:$0xff]
        %v2445 = vld [vmem:[%s221 + $0x30] sm:$0xff]
        %v2446 = vld [vmem:[%s221 + $0x38] sm:$0xff]
        %v2447 = vld [vmem:[%s221 + $0x40] sm:$0xff]
        %v2448 = vld [vmem:[%s221 + $0x48] sm:$0xff]
        %v2449 = vld [vmem:[%s221 + $0x50] sm:$0xff]
        %v2450 = vld [vmem:[%s221 + $0x58] sm:$0xff]
        %v2451 = vld [vmem:[%s221 + $0x60] sm:$0xff]
        %v2452 = vld [vmem:[%s221 + $0x68] sm:$0xff]
        %v2453 = vld [vmem:[%s221 + $0x70] sm:$0xff]
        %v2454 = vld [vmem:[%s221 + $0x78] sm:$0xff]
        %v2455 = vld [vmem:[%s221 + $0x80] sm:$0xff]
        %v2456 = vld [vmem:[%s221 + $0x88] sm:$0xff]
        %v2457 = vld [vmem:[%s221 + $0x90] sm:$0xff]
        %v2458 = vld [vmem:[%s221 + $0x98] sm:$0xff]
        %v2459 = vld [vmem:[%s221 + $0xa0] sm:$0xff]
        %v2460 = vld [vmem:[%s221 + $0xa8] sm:$0xff]
        %v2461 = vld [vmem:[%s221 + $0xb0] sm:$0xff]
        %v2462 = vld [vmem:[%s221 + $0xb8] sm:$0xff]
        %2487 = vrot.lane.b32.xlu0 %v2439, 109
        %v2488 = vpop.permute.xlu0 %2487
        %2489 = vrot.lane.b32.xlu0 %v2440, 109
        %v2490 = vpop.permute.xlu0 %2489
        %2491 = vrot.lane.b32.xlu0 %v2441, 109
        %v2492 = vpop.permute.xlu0 %2491
        %2493 = vrot.lane.b32.xlu0 %v2442, 109
        %v2494 = vpop.permute.xlu0 %2493
        %2495 = vrot.lane.b32.xlu0 %v2443, 109
        %v2496 = vpop.permute.xlu0 %2495
        %2497 = vrot.lane.b32.xlu0 %v2444, 109
        %v2498 = vpop.permute.xlu0 %2497
        %2499 = vrot.lane.b32.xlu0 %v2445, 109
        %v2500 = vpop.permute.xlu0 %2499
        %2501 = vrot.lane.b32.xlu0 %v2446, 109
        %v2502 = vpop.permute.xlu0 %2501
        %2503 = vrot.lane.b32.xlu0 %v2447, 109
        %v2504 = vpop.permute.xlu0 %2503
        %2505 = vrot.lane.b32.xlu0 %v2448, 109
        %v2506 = vpop.permute.xlu0 %2505
        %2507 = vrot.lane.b32.xlu0 %v2449, 109
        %v2508 = vpop.permute.xlu0 %2507
        %2509 = vrot.lane.b32.xlu0 %v2450, 109
        %v2510 = vpop.permute.xlu0 %2509
        %2511 = vrot.lane.b32.xlu0 %v2451, 109
        %v2512 = vpop.permute.xlu0 %2511
        %2513 = vrot.lane.b32.xlu0 %v2452, 109
        %v2514 = vpop.permute.xlu0 %2513
        %2515 = vrot.lane.b32.xlu0 %v2453, 109
        %v2516 = vpop.permute.xlu0 %2515
        %2517 = vrot.lane.b32.xlu0 %v2454, 109
        %v2518 = vpop.permute.xlu0 %2517
        %2519 = vrot.lane.b32.xlu0 %v2455, 109
        %v2520 = vpop.permute.xlu0 %2519
        %2521 = vrot.lane.b32.xlu0 %v2456, 109
        %v2522 = vpop.permute.xlu0 %2521
        %2523 = vrot.lane.b32.xlu0 %v2457, 109
        %v2524 = vpop.permute.xlu0 %2523
        %2525 = vrot.lane.b32.xlu0 %v2458, 109
        %v2526 = vpop.permute.xlu0 %2525
        %2527 = vrot.lane.b32.xlu0 %v2459, 109
        %v2528 = vpop.permute.xlu0 %2527
        %2529 = vrot.lane.b32.xlu0 %v2460, 109
        %v2530 = vpop.permute.xlu0 %2529
        %2531 = vrot.lane.b32.xlu0 %v2461, 109
        %v2532 = vpop.permute.xlu0 %2531
        %2533 = vrot.lane.b32.xlu0 %v2462, 109
        %v2534 = vpop.permute.xlu0 %2533
        %vm2535 = vcmask 891904
        %v2536 = vsel %vm2535, %v2488, %v2490
        %v2537 = vsel %vm2535, %v2490, %v2492
        %v2538 = vsel %vm2535, %v2494, %v2496
        %v2539 = vsel %vm2535, %v2496, %v2498
        %v2540 = vsel %vm2535, %v2500, %v2502
        %v2541 = vsel %vm2535, %v2502, %v2504
        %v2542 = vsel %vm2535, %v2506, %v2508
        %v2543 = vsel %vm2535, %v2508, %v2510
        %v2544 = vsel %vm2535, %v2512, %v2514
        %v2545 = vsel %vm2535, %v2514, %v2516
        %v2546 = vsel %vm2535, %v2518, %v2520
        %v2547 = vsel %vm2535, %v2520, %v2522
        %v2548 = vsel %vm2535, %v2524, %v2526
        %v2549 = vsel %vm2535, %v2526, %v2528
        %v2550 = vsel %vm2535, %v2530, %v2532
        %v2551 = vsel %vm2535, %v2532, %v2534
        %v2576 = vadd.f32 %v2415, %v2536
        %v2577 = vadd.f32 %v2416, %v2537
        %v2578 = vadd.f32 %v2417, %v2492
        %v2579 = vadd.f32 %v2418, %v2538
        %v2580 = vadd.f32 %v2419, %v2539
        %v2581 = vadd.f32 %v2420, %v2498
        %v2582 = vadd.f32 %v2421, %v2540
        %v2583 = vadd.f32 %v2422, %v2541
        %v2584 = vadd.f32 %v2423, %v2504
        %v2585 = vadd.f32 %v2424, %v2542
        %v2586 = vadd.f32 %v2425, %v2543
        %v2587 = vadd.f32 %v2426, %v2510
        %v2588 = vadd.f32 %v2427, %v2544
        %v2589 = vadd.f32 %v2428, %v2545
        %v2590 = vadd.f32 %v2429, %v2516
        %v2591 = vadd.f32 %v2430, %v2546
        %v2592 = vadd.f32 %v2431, %v2547
        %v2593 = vadd.f32 %v2432, %v2522
        %v2594 = vadd.f32 %v2433, %v2548
        %v2595 = vadd.f32 %v2434, %v2549
        %v2596 = vadd.f32 %v2435, %v2528
        %v2597 = vadd.f32 %v2436, %v2550
        %v2598 = vadd.f32 %v2437, %v2551
        %v2599 = vadd.f32 %v2438, %v2534
        %2600 = vst [vmem:[%s257] sm:$0xff] %v2576
        %2601 = vst [vmem:[%s257 + $0x8] sm:$0xff] %v2577
        %vm2602 = vcmask 261120
        %2603 = vst.msk [vmem:[%s257 + $0x10] sm:$0xff] %vm2602, %v2578
        %2604 = vst [vmem:[%s257 + $0x18] sm:$0xff] %v2579
        %2605 = vst [vmem:[%s257 + $0x20] sm:$0xff] %v2580
        %2606 = vst.msk [vmem:[%s257 + $0x28] sm:$0xff] %vm2602, %v2581
        %2607 = vst [vmem:[%s257 + $0x30] sm:$0xff] %v2582
        %2608 = vst [vmem:[%s257 + $0x38] sm:$0xff] %v2583
        %2609 = vst.msk [vmem:[%s257 + $0x40] sm:$0xff] %vm2602, %v2584
        %2610 = vst [vmem:[%s257 + $0x48] sm:$0xff] %v2585
        %2611 = vst [vmem:[%s257 + $0x50] sm:$0xff] %v2586
        %2612 = vst.msk [vmem:[%s257 + $0x58] sm:$0xff] %vm2602, %v2587
        %2613 = vst [vmem:[%s257 + $0x60] sm:$0xff] %v2588
        %2614 = vst [vmem:[%s257 + $0x68] sm:$0xff] %v2589
        %2615 = vst.msk [vmem:[%s257 + $0x70] sm:$0xff] %vm2602, %v2590
        %2616 = vst [vmem:[%s257 + $0x78] sm:$0xff] %v2591
        %2617 = vst [vmem:[%s257 + $0x80] sm:$0xff] %v2592
        %2618 = vst.msk [vmem:[%s257 + $0x88] sm:$0xff] %vm2602, %v2593
        %2619 = vst [vmem:[%s257 + $0x90] sm:$0xff] %v2594
        %2620 = vst [vmem:[%s257 + $0x98] sm:$0xff] %v2595
        %2621 = vst.msk [vmem:[%s257 + $0xa0] sm:$0xff] %vm2602, %v2596
        %2622 = vst [vmem:[%s257 + $0xa8] sm:$0xff] %v2597
        %2623 = vst [vmem:[%s257 + $0xb0] sm:$0xff] %v2598
        %2624 = vst.msk [vmem:[%s257 + $0xb8] sm:$0xff] %vm2602, %v2599
        %s2625 = sand.u32 %s120, 1
        %s2626 = scalar_lea.sflag [#allocation6], %s2625
        %s2627 = sand.u32 %s120, 1
        %s2628 = smul.addr %s2627, 192
        %s2629 = scalar_lea.vmem [#allocation12], %s2628
        // Predicated region
        $region53: #{tpu_custom_call.1} parent=35 // pred_check
          %p2630 = pneg %p130
        $region54: #{tpu_custom_call.1} parent=35 // pred_check_branch
          %2632 = sbr.rel (%p2630) target = $region56
        $region55: #{tpu_custom_call.1} parent=35 // pred_region
          %s2634 = ssub.s32 3072, 3072
          %2635 = vsyncadd %s2626, %s2634
          %s2636 = smul.addr %s23, 24
          %s2637 = smul.addr %s2636, 128
          %s2638 = scalar_lea.hbm %s4, %s2637
          %s2639 = sshll.u32 %s2629, 4
          %s2640 = int_to_ptr.vmem [resolvable:$true] %s2639
          %2645 = dma.vmem_to_hbm [thread:$0]  %s2640, 3072, %s2638, %s2626, 384, 384, 24
        $region56: #{tpu_custom_call.1} parent=35 // pred_fallthru
          _
      $region36: #{tpu_custom_call.1} parent=5 // pred_fallthru
        _
      %p2646 = scmp.le.s32.totalorder 2, %s18
      // Predicated region
      $region57: #{tpu_custom_call.1} parent=5 // pred_check
        %p2647 = pneg %p2646
      $region58: #{tpu_custom_call.1} parent=5 // pred_check_branch
        %2649 = sbr.rel (%p2647) target = $region60
      $region59: #{tpu_custom_call.1} parent=5 // pred_region
        %s2650 = ssub.s32 %s18, 2
        // Predicated region
        $region61: #{tpu_custom_call.1} parent=59 // pred_check
          %p2651 = pneg %p136
        $region62: #{tpu_custom_call.1} parent=59 // pred_check_branch
          %2653 = sbr.rel (%p2651) target = $region64
        $region63: #{tpu_custom_call.1} parent=59 // pred_region
          %s2654 = sand.u32 %s121, 1
          %s2655 = scalar_lea.sflag [#allocation6], %s2654
          %s2656 = sand.u32 %s121, 1
          %s2657 = smul.addr %s2656, 192
          %s2658 = scalar_lea.vmem [#allocation12], %s2657
          %2659 = dma.done %s2655, 3072
        $region64: #{tpu_custom_call.1} parent=59 // pred_fallthru
          _
      $region60: #{tpu_custom_call.1} parent=5 // pred_fallthru
        _
    $region6: #{tpu_custom_call.1} parent=1 // loop_footer
      %s22 = sadd.s32 1, %s18
    $region7: #{tpu_custom_call.1} parent=1 // loop_footer_branch
      %17 = sbr.rel target = $region3
    $region8: #{tpu_custom_call.1} parent=1 // loop_exit
      _
    %2660 = vsyncpa [#allocation5], 1
    %s2661 = scalar_lea.sflag [#allocation5], 1
    %2662 = vsyncpa %s2661, 1
    %2663 = vsyncpa [#allocation8], 1
    %2664 = vsyncpa [#allocation11], 1
    %2665 = vsyncpa [#allocation6], 1
    %s2666 = scalar_lea.sflag [#allocation6], 1
    %2667 = vsyncpa %s2666, 1

</llo_original>
